<compile_context>
chip_gen: v7x
topology: tpu7x:2x2x1
jax: 0.10.0
libtpu: 0.0.40
codegen_flags: <defaults>
</compile_context>

<pallas_src>
import functools

import jax
import jax.numpy as jnp
from jax import lax
from jax.experimental import pallas as pl
from jax.experimental.pallas import tpu as pltpu


def _probe_kernel(att_ref, w_ref, b_ref, out_ref, feat_ref):
    """One batch block per grid step.

    att_ref : (Bt, H, S, S)  attention[b, h, i, j], native layout/dtype
    w_ref   : (H, L, K)      w_ref[h, l, k] == weight[l, h*K + k]
    b_ref   : (L, 1)         f32
    out_ref : (Bt, L, S)     f32 logits, sequence axis last (lane-dense)
    feat_ref: (Bt, H, K, S)  f32 VMEM scratch for the collected top-K values
    """
    bt, n_heads, seq, _ = att_ref.shape
    n_labels = w_ref.shape[1]
    n_top = w_ref.shape[2]

    # Single f32 working copy of the block (cast in-kernel, DMA stays native).
    a = att_ref[...].astype(jnp.float32)                        # (Bt, H, S, S)
    # Hoisted: one iota over the reduction axis (axis 2 == "from" position i).
    iota_i = lax.broadcasted_iota(jnp.int32, a.shape, 2)

    # Iterative-selection top-K over axis 2, fused across batch rows and heads.
    # Matches torch.topk value semantics (descending, duplicates returned):
    # exactly one occurrence of the running max is masked per step.
    for k in range(n_top):
        m = jnp.max(a, axis=2, keepdims=True)                   # (Bt, H, 1, S)
        feat_ref[:, :, k : k + 1, :] = m
        if k + 1 < n_top:                                       # skip last mask
            hit = a == m
            idx = jnp.min(jnp.where(hit, iota_i, seq), axis=2, keepdims=True)
            a = jnp.where(iota_i == idx, -jnp.inf, a)

    bias = b_ref[...]                                           # (L, 1) -> broadcasts over S
    for bi in range(bt):
        acc = jnp.zeros((n_labels, seq), jnp.float32)
        for h in range(n_heads):
            acc = acc + jnp.dot(w_ref[h], feat_ref[bi, h],      # (L,K)@(K,S)
                                preferred_element_type=jnp.float32)
        out_ref[bi] = (acc + bias).astype(out_ref.dtype)


def _pick_batch_block(batch, per_elem_bytes):
    """Largest divisor of `batch` whose attention block fits a conservative
    per-buffer VMEM budget, while keeping >= 2 grid steps when possible so the
    'parallel' grid axis can span v7x's two TensorCores."""
    budget = 4 * 1024 * 1024
    cap = max(1, budget // max(per_elem_bytes, 1))
    if batch >= 2:
        cap = min(cap, max(1, batch // 2))
    best = 1
    for d in range(1, batch + 1):
        if batch % d == 0 and d <= cap:
            best = d
    return best


@functools.partial(jax.jit, static_argnames=("num_top_weights",))
def probe_forward(attention, weight, bias, *, num_top_weights):
    """attention: (B, H, S, S) as in the PyTorch module (all heads probed).
    weight: (num_labels, H * K) nn.Linear weight.  bias: (num_labels,).
    Returns logits of shape (B, S, num_labels)."""
    B, H, S, S2 = attention.shape
    assert S == S2
    K = num_top_weights
    assert K <= S
    L = bias.shape[-1]
    assert weight.shape == (L, H * K)

    # Tiny parameter re-layouts (module feature index = h*K + k):
    # per-head weight slab (H, L, K); bias as a lane-broadcastable (L, 1).
    w3 = jnp.transpose(weight.reshape(L, H, K), (1, 0, 2)).astype(jnp.float32)
    b2 = bias.reshape(L, 1).astype(jnp.float32)

    per_elem_bytes = H * S * S * attention.dtype.itemsize
    Bt = _pick_batch_block(B, per_elem_bytes)
    grid = (B // Bt,)

    # VMEM estimate: double-buffered attention block (native dtype) + in-kernel
    # f32 working copies + feature scratch + double-buffered output + params.
    est = (2 * Bt * per_elem_bytes
           + 2 * Bt * H * S * S * 4
           + Bt * H * K * S * 4
           + 2 * Bt * L * S * 4
           + (H * L * K + L) * 4
           + (1 << 20))
    vmem_limit = int(min(max(est, 32 * 2**20), 96 * 2**20))
    # TODO(synk): for very large per-element blocks (> ~16 MiB) add a grid axis
    # over heads ("arbitrary", with a pl.when-initialized accumulator) so the
    # block still double-buffers within v7x's 64 MiB VMEM.

    out_t = pl.pallas_call(
        _probe_kernel,
        out_shape=jax.ShapeDtypeStruct((B, L, S), jnp.float32),
        grid_spec=pltpu.PrefetchScalarGridSpec(
            num_scalar_prefetch=0,
            grid=grid,
            in_specs=[
                pl.BlockSpec((Bt, H, S, S), lambda g: (g, 0, 0, 0)),
                pl.BlockSpec((H, L, K), lambda g: (0, 0, 0)),
                pl.BlockSpec((L, 1), lambda g: (0, 0)),
            ],
            out_specs=pl.BlockSpec((Bt, L, S), lambda g: (g, 0, 0)),
            scratch_shapes=[pltpu.VMEM((Bt, H, K, S), jnp.float32)],
        ),
        compiler_params=pltpu.CompilerParams(
            dimension_semantics=("parallel",),
            vmem_limit_bytes=vmem_limit),
    )(attention, w3, b2)

    # Tiny logits tensor: present it as (B, S, num_labels) like the module.
    return jnp.transpose(out_t, (0, 2, 1))


def _reference_forward(attention, weight, bias, num_top_weights):
    """Pure-JAX replica of the PyTorch forward (eval mode)."""
    B, H, S, _ = attention.shape
    K = num_top_weights
    stacked = jnp.transpose(attention, (0, 1, 3, 2))          # (B, H, S, S)
    feats = lax.top_k(stacked, K)[0]                          # (B, H, S, K)
    feats = jnp.transpose(feats, (0, 2, 1, 3)).reshape(B, S, H * K)
    return feats @ weight.T + bias                            # (B, S, L)


if __name__ == "__main__":
    # Small, module-consistent shapes.
    B, H, S = 2, 4, 16          # batch, num_attention_heads, sequence_length
    K = 10                      # num_top_weights (module default)
    L = 8                       # config.num_labels

    key = jax.random.PRNGKey(0)
    k_att, k_w, k_b = jax.random.split(key, 3)

    # attention (B, H, S, S): row-normalized like real attention maps.
    attn_logits = jax.random.normal(k_att, (B, H, S, S), dtype=jnp.float32)
    attention = jax.nn.softmax(attn_logits, axis=-1)

    # Deterministic nn.Linear(H*K, L) parameters.
    weight = 0.05 * jax.random.normal(k_w, (L, H * K), dtype=jnp.float32)
    bias = 0.01 * jax.random.normal(k_b, (L,), dtype=jnp.float32)

    logits = probe_forward(attention, weight, bias, num_top_weights=K)
    logits = jax.block_until_ready(logits)
    assert logits.shape == (B, S, L)

    ref = _reference_forward(attention, weight, bias, K)
    assert jnp.allclose(logits, ref, atol=1e-3, rtol=1e-3), (
        float(jnp.max(jnp.abs(logits - ref))))

    # TODO(synk): training-mode Dropout and the optional cross-entropy/accuracy
    # branch (targets is not None) are not part of this inference kernel.
    print("KERNEL_OK")
</pallas_src>

<mosaic_0001>
module attributes {stable_mosaic.version = 11 : i64} {
  func.func @_probe_kernel(%arg0: i32, %arg1: memref<1x4x16x16xf32, #tpu.memory_space<vmem>>, %arg2: memref<4x8x10xf32, #tpu.memory_space<vmem>>, %arg3: memref<8x1xf32, #tpu.memory_space<vmem>>, %arg4: memref<1x8x16xf32, #tpu.memory_space<vmem>>, %arg5: memref<1x4x10x16xf32, #tpu.memory_space<vmem>>) attributes {dimension_semantics = [#tpu.dimension_semantics<parallel>], iteration_bounds = array<i64: 2>, scalar_prefetch = 0 : i64, scratch_operands = 1 : i64, tpu.core_type = #tpu.core_type<tc>, window_params = [{transform_indices = @transform_0, window_bounds = array<i64: 1, 4, 16, 16>}, {pipeline_mode = #tpu.pipeline_mode<synchronous>, transform_indices = @transform_1, window_bounds = array<i64: 4, 8, 10>}, {pipeline_mode = #tpu.pipeline_mode<synchronous>, transform_indices = @transform_2, window_bounds = array<i64: 8, 1>}, {transform_indices = @transform_3, window_bounds = array<i64: 1, 8, 16>}]} {
    %c0 = arith.constant 0 : index
    %c0_0 = arith.constant 0 : index
    %c0_1 = arith.constant 0 : index
    %c0_2 = arith.constant 0 : index
    %0 = vector.load %arg1[%c0, %c0_0, %c0_1, %c0_2] : memref<1x4x16x16xf32, #tpu.memory_space<vmem>>, vector<1x4x16x16xf32>
    %1 = tpu.iota {dimensions = array<i32: 2>} : vector<1x4x16x16xi32>
    %cst = arith.constant dense<0xFF800000> : vector<1x4x16xf32>
    %2 = vector.multi_reduction <maximumf>, %0, %cst [2] : vector<1x4x16x16xf32> to vector<1x4x16xf32>
    %3 = vector.shape_cast %2 : vector<1x4x16xf32> to vector<1x4x1x16xf32>
    %c0_3 = arith.constant 0 : index
    %c0_4 = arith.constant 0 : index
    %c0_5 = arith.constant 0 : index
    %c0_6 = arith.constant 0 : index
    %4 = vector.load %arg5[%c0_3, %c0_4, %c0_5, %c0_6] : memref<1x4x10x16xf32, #tpu.memory_space<vmem>>, vector<1x4x1x16xf32>
    tpu.vector_store %arg5[%c0_3, %c0_4, %c0_5, %c0_6], %3 {strides = array<i32>} : memref<1x4x10x16xf32, #tpu.memory_space<vmem>>, vector<1x4x1x16xf32>,
    %5 = vector.broadcast %3 : vector<1x4x1x16xf32> to vector<1x4x16x16xf32>
    %6 = arith.cmpf oeq, %0, %5 : vector<1x4x16x16xf32>
    %c16_i32 = arith.constant 16 : i32
    %7 = vector.broadcast %c16_i32 : i32 to vector<1x4x16x16xi32>
    %8 = arith.select %6, %1, %7 : vector<1x4x16x16xi1>, vector<1x4x16x16xi32>
    %cst_7 = arith.constant dense<2147483647> : vector<1x4x16xi32>
    %9 = vector.multi_reduction <minsi>, %8, %cst_7 [2] : vector<1x4x16x16xi32> to vector<1x4x16xi32>
    %10 = vector.shape_cast %9 : vector<1x4x16xi32> to vector<1x4x1x16xi32>
    %11 = vector.broadcast %10 : vector<1x4x1x16xi32> to vector<1x4x16x16xi32>
    %12 = arith.cmpi eq, %1, %11 : vector<1x4x16x16xi32>
    %cst_8 = arith.constant 0xFF800000 : f32
    %13 = vector.broadcast %cst_8 : f32 to vector<1x4x16x16xf32>
    %14 = arith.select %12, %13, %0 : vector<1x4x16x16xi1>, vector<1x4x16x16xf32>
    %cst_9 = arith.constant dense<0xFF800000> : vector<1x4x16xf32>
    %15 = vector.multi_reduction <maximumf>, %14, %cst_9 [2] : vector<1x4x16x16xf32> to vector<1x4x16xf32>
    %16 = vector.shape_cast %15 : vector<1x4x16xf32> to vector<1x4x1x16xf32>
    %c0_10 = arith.constant 0 : index
    %c0_11 = arith.constant 0 : index
    %c1 = arith.constant 1 : index
    %c0_12 = arith.constant 0 : index
    %17 = vector.load %arg5[%c0_10, %c0_11, %c1, %c0_12] : memref<1x4x10x16xf32, #tpu.memory_space<vmem>>, vector<1x4x1x16xf32>
    tpu.vector_store %arg5[%c0_10, %c0_11, %c1, %c0_12], %16 {strides = array<i32>} : memref<1x4x10x16xf32, #tpu.memory_space<vmem>>, vector<1x4x1x16xf32>,
    %18 = vector.broadcast %16 : vector<1x4x1x16xf32> to vector<1x4x16x16xf32>
    %19 = arith.cmpf oeq, %14, %18 : vector<1x4x16x16xf32>
    %c16_i32_13 = arith.constant 16 : i32
    %20 = vector.broadcast %c16_i32_13 : i32 to vector<1x4x16x16xi32>
    %21 = arith.select %19, %1, %20 : vector<1x4x16x16xi1>, vector<1x4x16x16xi32>
    %cst_14 = arith.constant dense<2147483647> : vector<1x4x16xi32>
    %22 = vector.multi_reduction <minsi>, %21, %cst_14 [2] : vector<1x4x16x16xi32> to vector<1x4x16xi32>
    %23 = vector.shape_cast %22 : vector<1x4x16xi32> to vector<1x4x1x16xi32>
    %24 = vector.broadcast %23 : vector<1x4x1x16xi32> to vector<1x4x16x16xi32>
    %25 = arith.cmpi eq, %1, %24 : vector<1x4x16x16xi32>
    %cst_15 = arith.constant 0xFF800000 : f32
    %26 = vector.broadcast %cst_15 : f32 to vector<1x4x16x16xf32>
    %27 = arith.select %25, %26, %14 : vector<1x4x16x16xi1>, vector<1x4x16x16xf32>
    %cst_16 = arith.constant dense<0xFF800000> : vector<1x4x16xf32>
    %28 = vector.multi_reduction <maximumf>, %27, %cst_16 [2] : vector<1x4x16x16xf32> to vector<1x4x16xf32>
    %29 = vector.shape_cast %28 : vector<1x4x16xf32> to vector<1x4x1x16xf32>
    %c0_17 = arith.constant 0 : index
    %c0_18 = arith.constant 0 : index
    %c2 = arith.constant 2 : index
    %c0_19 = arith.constant 0 : index
    %30 = vector.load %arg5[%c0_17, %c0_18, %c2, %c0_19] : memref<1x4x10x16xf32, #tpu.memory_space<vmem>>, vector<1x4x1x16xf32>
    tpu.vector_store %arg5[%c0_17, %c0_18, %c2, %c0_19], %29 {strides = array<i32>} : memref<1x4x10x16xf32, #tpu.memory_space<vmem>>, vector<1x4x1x16xf32>,
    %31 = vector.broadcast %29 : vector<1x4x1x16xf32> to vector<1x4x16x16xf32>
    %32 = arith.cmpf oeq, %27, %31 : vector<1x4x16x16xf32>
    %c16_i32_20 = arith.constant 16 : i32
    %33 = vector.broadcast %c16_i32_20 : i32 to vector<1x4x16x16xi32>
    %34 = arith.select %32, %1, %33 : vector<1x4x16x16xi1>, vector<1x4x16x16xi32>
    %cst_21 = arith.constant dense<2147483647> : vector<1x4x16xi32>
    %35 = vector.multi_reduction <minsi>, %34, %cst_21 [2] : vector<1x4x16x16xi32> to vector<1x4x16xi32>
    %36 = vector.shape_cast %35 : vector<1x4x16xi32> to vector<1x4x1x16xi32>
    %37 = vector.broadcast %36 : vector<1x4x1x16xi32> to vector<1x4x16x16xi32>
    %38 = arith.cmpi eq, %1, %37 : vector<1x4x16x16xi32>
    %cst_22 = arith.constant 0xFF800000 : f32
    %39 = vector.broadcast %cst_22 : f32 to vector<1x4x16x16xf32>
    %40 = arith.select %38, %39, %27 : vector<1x4x16x16xi1>, vector<1x4x16x16xf32>
    %cst_23 = arith.constant dense<0xFF800000> : vector<1x4x16xf32>
    %41 = vector.multi_reduction <maximumf>, %40, %cst_23 [2] : vector<1x4x16x16xf32> to vector<1x4x16xf32>
    %42 = vector.shape_cast %41 : vector<1x4x16xf32> to vector<1x4x1x16xf32>
    %c0_24 = arith.constant 0 : index
    %c0_25 = arith.constant 0 : index
    %c3 = arith.constant 3 : index
    %c0_26 = arith.constant 0 : index
    %43 = vector.load %arg5[%c0_24, %c0_25, %c3, %c0_26] : memref<1x4x10x16xf32, #tpu.memory_space<vmem>>, vector<1x4x1x16xf32>
    tpu.vector_store %arg5[%c0_24, %c0_25, %c3, %c0_26], %42 {strides = array<i32>} : memref<1x4x10x16xf32, #tpu.memory_space<vmem>>, vector<1x4x1x16xf32>,
    %44 = vector.broadcast %42 : vector<1x4x1x16xf32> to vector<1x4x16x16xf32>
    %45 = arith.cmpf oeq, %40, %44 : vector<1x4x16x16xf32>
    %c16_i32_27 = arith.constant 16 : i32
    %46 = vector.broadcast %c16_i32_27 : i32 to vector<1x4x16x16xi32>
    %47 = arith.select %45, %1, %46 : vector<1x4x16x16xi1>, vector<1x4x16x16xi32>
    %cst_28 = arith.constant dense<2147483647> : vector<1x4x16xi32>
    %48 = vector.multi_reduction <minsi>, %47, %cst_28 [2] : vector<1x4x16x16xi32> to vector<1x4x16xi32>
    %49 = vector.shape_cast %48 : vector<1x4x16xi32> to vector<1x4x1x16xi32>
    %50 = vector.broadcast %49 : vector<1x4x1x16xi32> to vector<1x4x16x16xi32>
    %51 = arith.cmpi eq, %1, %50 : vector<1x4x16x16xi32>
    %cst_29 = arith.constant 0xFF800000 : f32
    %52 = vector.broadcast %cst_29 : f32 to vector<1x4x16x16xf32>
    %53 = arith.select %51, %52, %40 : vector<1x4x16x16xi1>, vector<1x4x16x16xf32>
    %cst_30 = arith.constant dense<0xFF800000> : vector<1x4x16xf32>
    %54 = vector.multi_reduction <maximumf>, %53, %cst_30 [2] : vector<1x4x16x16xf32> to vector<1x4x16xf32>
    %55 = vector.shape_cast %54 : vector<1x4x16xf32> to vector<1x4x1x16xf32>
    %c0_31 = arith.constant 0 : index
    %c0_32 = arith.constant 0 : index
    %c4 = arith.constant 4 : index
    %c0_33 = arith.constant 0 : index
    %56 = vector.load %arg5[%c0_31, %c0_32, %c4, %c0_33] : memref<1x4x10x16xf32, #tpu.memory_space<vmem>>, vector<1x4x1x16xf32>
    tpu.vector_store %arg5[%c0_31, %c0_32, %c4, %c0_33], %55 {strides = array<i32>} : memref<1x4x10x16xf32, #tpu.memory_space<vmem>>, vector<1x4x1x16xf32>,
    %57 = vector.broadcast %55 : vector<1x4x1x16xf32> to vector<1x4x16x16xf32>
    %58 = arith.cmpf oeq, %53, %57 : vector<1x4x16x16xf32>
    %c16_i32_34 = arith.constant 16 : i32
    %59 = vector.broadcast %c16_i32_34 : i32 to vector<1x4x16x16xi32>
    %60 = arith.select %58, %1, %59 : vector<1x4x16x16xi1>, vector<1x4x16x16xi32>
    %cst_35 = arith.constant dense<2147483647> : vector<1x4x16xi32>
    %61 = vector.multi_reduction <minsi>, %60, %cst_35 [2] : vector<1x4x16x16xi32> to vector<1x4x16xi32>
    %62 = vector.shape_cast %61 : vector<1x4x16xi32> to vector<1x4x1x16xi32>
    %63 = vector.broadcast %62 : vector<1x4x1x16xi32> to vector<1x4x16x16xi32>
    %64 = arith.cmpi eq, %1, %63 : vector<1x4x16x16xi32>
    %cst_36 = arith.constant 0xFF800000 : f32
    %65 = vector.broadcast %cst_36 : f32 to vector<1x4x16x16xf32>
    %66 = arith.select %64, %65, %53 : vector<1x4x16x16xi1>, vector<1x4x16x16xf32>
    %cst_37 = arith.constant dense<0xFF800000> : vector<1x4x16xf32>
    %67 = vector.multi_reduction <maximumf>, %66, %cst_37 [2] : vector<1x4x16x16xf32> to vector<1x4x16xf32>
    %68 = vector.shape_cast %67 : vector<1x4x16xf32> to vector<1x4x1x16xf32>
    %c0_38 = arith.constant 0 : index
    %c0_39 = arith.constant 0 : index
    %c5 = arith.constant 5 : index
    %c0_40 = arith.constant 0 : index
    %69 = vector.load %arg5[%c0_38, %c0_39, %c5, %c0_40] : memref<1x4x10x16xf32, #tpu.memory_space<vmem>>, vector<1x4x1x16xf32>
    tpu.vector_store %arg5[%c0_38, %c0_39, %c5, %c0_40], %68 {strides = array<i32>} : memref<1x4x10x16xf32, #tpu.memory_space<vmem>>, vector<1x4x1x16xf32>,
    %70 = vector.broadcast %68 : vector<1x4x1x16xf32> to vector<1x4x16x16xf32>
    %71 = arith.cmpf oeq, %66, %70 : vector<1x4x16x16xf32>
    %c16_i32_41 = arith.constant 16 : i32
    %72 = vector.broadcast %c16_i32_41 : i32 to vector<1x4x16x16xi32>
    %73 = arith.select %71, %1, %72 : vector<1x4x16x16xi1>, vector<1x4x16x16xi32>
    %cst_42 = arith.constant dense<2147483647> : vector<1x4x16xi32>
    %74 = vector.multi_reduction <minsi>, %73, %cst_42 [2] : vector<1x4x16x16xi32> to vector<1x4x16xi32>
    %75 = vector.shape_cast %74 : vector<1x4x16xi32> to vector<1x4x1x16xi32>
    %76 = vector.broadcast %75 : vector<1x4x1x16xi32> to vector<1x4x16x16xi32>
    %77 = arith.cmpi eq, %1, %76 : vector<1x4x16x16xi32>
    %cst_43 = arith.constant 0xFF800000 : f32
    %78 = vector.broadcast %cst_43 : f32 to vector<1x4x16x16xf32>
    %79 = arith.select %77, %78, %66 : vector<1x4x16x16xi1>, vector<1x4x16x16xf32>
    %cst_44 = arith.constant dense<0xFF800000> : vector<1x4x16xf32>
    %80 = vector.multi_reduction <maximumf>, %79, %cst_44 [2] : vector<1x4x16x16xf32> to vector<1x4x16xf32>
    %81 = vector.shape_cast %80 : vector<1x4x16xf32> to vector<1x4x1x16xf32>
    %c0_45 = arith.constant 0 : index
    %c0_46 = arith.constant 0 : index
    %c6 = arith.constant 6 : index
    %c0_47 = arith.constant 0 : index
    %82 = vector.load %arg5[%c0_45, %c0_46, %c6, %c0_47] : memref<1x4x10x16xf32, #tpu.memory_space<vmem>>, vector<1x4x1x16xf32>
    tpu.vector_store %arg5[%c0_45, %c0_46, %c6, %c0_47], %81 {strides = array<i32>} : memref<1x4x10x16xf32, #tpu.memory_space<vmem>>, vector<1x4x1x16xf32>,
    %83 = vector.broadcast %81 : vector<1x4x1x16xf32> to vector<1x4x16x16xf32>
    %84 = arith.cmpf oeq, %79, %83 : vector<1x4x16x16xf32>
    %c16_i32_48 = arith.constant 16 : i32
    %85 = vector.broadcast %c16_i32_48 : i32 to vector<1x4x16x16xi32>
    %86 = arith.select %84, %1, %85 : vector<1x4x16x16xi1>, vector<1x4x16x16xi32>
    %cst_49 = arith.constant dense<2147483647> : vector<1x4x16xi32>
    %87 = vector.multi_reduction <minsi>, %86, %cst_49 [2] : vector<1x4x16x16xi32> to vector<1x4x16xi32>
    %88 = vector.shape_cast %87 : vector<1x4x16xi32> to vector<1x4x1x16xi32>
    %89 = vector.broadcast %88 : vector<1x4x1x16xi32> to vector<1x4x16x16xi32>
    %90 = arith.cmpi eq, %1, %89 : vector<1x4x16x16xi32>
    %cst_50 = arith.constant 0xFF800000 : f32
    %91 = vector.broadcast %cst_50 : f32 to vector<1x4x16x16xf32>
    %92 = arith.select %90, %91, %79 : vector<1x4x16x16xi1>, vector<1x4x16x16xf32>
    %cst_51 = arith.constant dense<0xFF800000> : vector<1x4x16xf32>
    %93 = vector.multi_reduction <maximumf>, %92, %cst_51 [2] : vector<1x4x16x16xf32> to vector<1x4x16xf32>
    %94 = vector.shape_cast %93 : vector<1x4x16xf32> to vector<1x4x1x16xf32>
    %c0_52 = arith.constant 0 : index
    %c0_53 = arith.constant 0 : index
    %c7 = arith.constant 7 : index
    %c0_54 = arith.constant 0 : index
    %95 = vector.load %arg5[%c0_52, %c0_53, %c7, %c0_54] : memref<1x4x10x16xf32, #tpu.memory_space<vmem>>, vector<1x4x1x16xf32>
    tpu.vector_store %arg5[%c0_52, %c0_53, %c7, %c0_54], %94 {strides = array<i32>} : memref<1x4x10x16xf32, #tpu.memory_space<vmem>>, vector<1x4x1x16xf32>,
    %96 = vector.broadcast %94 : vector<1x4x1x16xf32> to vector<1x4x16x16xf32>
    %97 = arith.cmpf oeq, %92, %96 : vector<1x4x16x16xf32>
    %c16_i32_55 = arith.constant 16 : i32
    %98 = vector.broadcast %c16_i32_55 : i32 to vector<1x4x16x16xi32>
    %99 = arith.select %97, %1, %98 : vector<1x4x16x16xi1>, vector<1x4x16x16xi32>
    %cst_56 = arith.constant dense<2147483647> : vector<1x4x16xi32>
    %100 = vector.multi_reduction <minsi>, %99, %cst_56 [2] : vector<1x4x16x16xi32> to vector<1x4x16xi32>
    %101 = vector.shape_cast %100 : vector<1x4x16xi32> to vector<1x4x1x16xi32>
    %102 = vector.broadcast %101 : vector<1x4x1x16xi32> to vector<1x4x16x16xi32>
    %103 = arith.cmpi eq, %1, %102 : vector<1x4x16x16xi32>
    %cst_57 = arith.constant 0xFF800000 : f32
    %104 = vector.broadcast %cst_57 : f32 to vector<1x4x16x16xf32>
    %105 = arith.select %103, %104, %92 : vector<1x4x16x16xi1>, vector<1x4x16x16xf32>
    %cst_58 = arith.constant dense<0xFF800000> : vector<1x4x16xf32>
    %106 = vector.multi_reduction <maximumf>, %105, %cst_58 [2] : vector<1x4x16x16xf32> to vector<1x4x16xf32>
    %107 = vector.shape_cast %106 : vector<1x4x16xf32> to vector<1x4x1x16xf32>
    %c0_59 = arith.constant 0 : index
    %c0_60 = arith.constant 0 : index
    %c8 = arith.constant 8 : index
    %c0_61 = arith.constant 0 : index
    %108 = vector.load %arg5[%c0_59, %c0_60, %c8, %c0_61] : memref<1x4x10x16xf32, #tpu.memory_space<vmem>>, vector<1x4x1x16xf32>
    tpu.vector_store %arg5[%c0_59, %c0_60, %c8, %c0_61], %107 {strides = array<i32>} : memref<1x4x10x16xf32, #tpu.memory_space<vmem>>, vector<1x4x1x16xf32>,
    %109 = vector.broadcast %107 : vector<1x4x1x16xf32> to vector<1x4x16x16xf32>
    %110 = arith.cmpf oeq, %105, %109 : vector<1x4x16x16xf32>
    %c16_i32_62 = arith.constant 16 : i32
    %111 = vector.broadcast %c16_i32_62 : i32 to vector<1x4x16x16xi32>
    %112 = arith.select %110, %1, %111 : vector<1x4x16x16xi1>, vector<1x4x16x16xi32>
    %cst_63 = arith.constant dense<2147483647> : vector<1x4x16xi32>
    %113 = vector.multi_reduction <minsi>, %112, %cst_63 [2] : vector<1x4x16x16xi32> to vector<1x4x16xi32>
    %114 = vector.shape_cast %113 : vector<1x4x16xi32> to vector<1x4x1x16xi32>
    %115 = vector.broadcast %114 : vector<1x4x1x16xi32> to vector<1x4x16x16xi32>
    %116 = arith.cmpi eq, %1, %115 : vector<1x4x16x16xi32>
    %cst_64 = arith.constant 0xFF800000 : f32
    %117 = vector.broadcast %cst_64 : f32 to vector<1x4x16x16xf32>
    %118 = arith.select %116, %117, %105 : vector<1x4x16x16xi1>, vector<1x4x16x16xf32>
    %cst_65 = arith.constant dense<0xFF800000> : vector<1x4x16xf32>
    %119 = vector.multi_reduction <maximumf>, %118, %cst_65 [2] : vector<1x4x16x16xf32> to vector<1x4x16xf32>
    %120 = vector.shape_cast %119 : vector<1x4x16xf32> to vector<1x4x1x16xf32>
    %c0_66 = arith.constant 0 : index
    %c0_67 = arith.constant 0 : index
    %c9 = arith.constant 9 : index
    %c0_68 = arith.constant 0 : index
    %121 = vector.load %arg5[%c0_66, %c0_67, %c9, %c0_68] : memref<1x4x10x16xf32, #tpu.memory_space<vmem>>, vector<1x4x1x16xf32>
    tpu.vector_store %arg5[%c0_66, %c0_67, %c9, %c0_68], %120 {strides = array<i32>} : memref<1x4x10x16xf32, #tpu.memory_space<vmem>>, vector<1x4x1x16xf32>,
    %c0_69 = arith.constant 0 : index
    %c0_70 = arith.constant 0 : index
    %122 = vector.load %arg3[%c0_69, %c0_70] : memref<8x1xf32, #tpu.memory_space<vmem>>, vector<8x1xf32>
    %cst_71 = arith.constant 0.000000e+00 : f32
    %123 = vector.broadcast %cst_71 : f32 to vector<8x16xf32>
    %c0_72 = arith.constant 0 : index
    %c0_73 = arith.constant 0 : index
    %c0_74 = arith.constant 0 : index
    %124 = vector.load %arg2[%c0_72, %c0_73, %c0_74] : memref<4x8x10xf32, #tpu.memory_space<vmem>>, vector<1x8x10xf32>
    %125 = vector.shape_cast %124 : vector<1x8x10xf32> to vector<8x10xf32>
    %c0_75 = arith.constant 0 : index
    %c0_76 = arith.constant 0 : index
    %c0_77 = arith.constant 0 : index
    %c0_78 = arith.constant 0 : index
    %126 = vector.load %arg5[%c0_75, %c0_76, %c0_77, %c0_78] : memref<1x4x10x16xf32, #tpu.memory_space<vmem>>, vector<1x1x10x16xf32>
    %127 = vector.shape_cast %126 : vector<1x1x10x16xf32> to vector<10x16xf32>
    %cst_79 = arith.constant dense<0.000000e+00> : vector<8x16xf32>
    %128 = tpu.matmul %125, %127, %cst_79 {dimension_numbers = #tpu.dot_dimension_numbers<[1], [0], [0], [1], [0, 0, 1, 1], [], []>} : vector<8x10xf32>, vector<10x16xf32>, vector<8x16xf32> -> vector<8x16xf32>
    %129 = arith.addf %123, %128 : vector<8x16xf32>
    %c1_80 = arith.constant 1 : index
    %c0_81 = arith.constant 0 : index
    %c0_82 = arith.constant 0 : index
    %130 = vector.load %arg2[%c1_80, %c0_81, %c0_82] : memref<4x8x10xf32, #tpu.memory_space<vmem>>, vector<1x8x10xf32>
    %131 = vector.shape_cast %130 : vector<1x8x10xf32> to vector<8x10xf32>
    %c0_83 = arith.constant 0 : index
    %c1_84 = arith.constant 1 : index
    %c0_85 = arith.constant 0 : index
    %c0_86 = arith.constant 0 : index
    %132 = vector.load %arg5[%c0_83, %c1_84, %c0_85, %c0_86] : memref<1x4x10x16xf32, #tpu.memory_space<vmem>>, vector<1x1x10x16xf32>
    %133 = vector.shape_cast %132 : vector<1x1x10x16xf32> to vector<10x16xf32>
    %cst_87 = arith.constant dense<0.000000e+00> : vector<8x16xf32>
    %134 = tpu.matmul %131, %133, %cst_87 {dimension_numbers = #tpu.dot_dimension_numbers<[1], [0], [0], [1], [0, 0, 1, 1], [], []>} : vector<8x10xf32>, vector<10x16xf32>, vector<8x16xf32> -> vector<8x16xf32>
    %135 = arith.addf %129, %134 : vector<8x16xf32>
    %c2_88 = arith.constant 2 : index
    %c0_89 = arith.constant 0 : index
    %c0_90 = arith.constant 0 : index
    %136 = vector.load %arg2[%c2_88, %c0_89, %c0_90] : memref<4x8x10xf32, #tpu.memory_space<vmem>>, vector<1x8x10xf32>
    %137 = vector.shape_cast %136 : vector<1x8x10xf32> to vector<8x10xf32>
    %c0_91 = arith.constant 0 : index
    %c2_92 = arith.constant 2 : index
    %c0_93 = arith.constant 0 : index
    %c0_94 = arith.constant 0 : index
    %138 = vector.load %arg5[%c0_91, %c2_92, %c0_93, %c0_94] : memref<1x4x10x16xf32, #tpu.memory_space<vmem>>, vector<1x1x10x16xf32>
    %139 = vector.shape_cast %138 : vector<1x1x10x16xf32> to vector<10x16xf32>
    %cst_95 = arith.constant dense<0.000000e+00> : vector<8x16xf32>
    %140 = tpu.matmul %137, %139, %cst_95 {dimension_numbers = #tpu.dot_dimension_numbers<[1], [0], [0], [1], [0, 0, 1, 1], [], []>} : vector<8x10xf32>, vector<10x16xf32>, vector<8x16xf32> -> vector<8x16xf32>
    %141 = arith.addf %135, %140 : vector<8x16xf32>
    %c3_96 = arith.constant 3 : index
    %c0_97 = arith.constant 0 : index
    %c0_98 = arith.constant 0 : index
    %142 = vector.load %arg2[%c3_96, %c0_97, %c0_98] : memref<4x8x10xf32, #tpu.memory_space<vmem>>, vector<1x8x10xf32>
    %143 = vector.shape_cast %142 : vector<1x8x10xf32> to vector<8x10xf32>
    %c0_99 = arith.constant 0 : index
    %c3_100 = arith.constant 3 : index
    %c0_101 = arith.constant 0 : index
    %c0_102 = arith.constant 0 : index
    %144 = vector.load %arg5[%c0_99, %c3_100, %c0_101, %c0_102] : memref<1x4x10x16xf32, #tpu.memory_space<vmem>>, vector<1x1x10x16xf32>
    %145 = vector.shape_cast %144 : vector<1x1x10x16xf32> to vector<10x16xf32>
    %cst_103 = arith.constant dense<0.000000e+00> : vector<8x16xf32>
    %146 = tpu.matmul %143, %145, %cst_103 {dimension_numbers = #tpu.dot_dimension_numbers<[1], [0], [0], [1], [0, 0, 1, 1], [], []>} : vector<8x10xf32>, vector<10x16xf32>, vector<8x16xf32> -> vector<8x16xf32>
    %147 = arith.addf %141, %146 : vector<8x16xf32>
    %148 = vector.broadcast %122 : vector<8x1xf32> to vector<8x16xf32>
    %149 = arith.addf %147, %148 : vector<8x16xf32>
    %c0_104 = arith.constant 0 : index
    %c0_105 = arith.constant 0 : index
    %c0_106 = arith.constant 0 : index
    %150 = vector.load %arg4[%c0_104, %c0_105, %c0_106] : memref<1x8x16xf32, #tpu.memory_space<vmem>>, vector<1x8x16xf32>
    %151 = vector.shape_cast %150 : vector<1x8x16xf32> to vector<8x16xf32>
    %152 = vector.shape_cast %149 : vector<8x16xf32> to vector<1x8x16xf32>
    tpu.vector_store %arg4[%c0_104, %c0_105, %c0_106], %152 {strides = array<i32>} : memref<1x8x16xf32, #tpu.memory_space<vmem>>, vector<1x8x16xf32>,
    return
  }
  func.func @transform_0(%arg0: i32) -> (i32, i32, i32, i32) {
    %c0_i32 = arith.constant 0 : i32
    %c0_i32_0 = arith.constant 0 : i32
    %c0_i32_1 = arith.constant 0 : i32
    %c0_i32_2 = arith.constant 0 : i32
    return %arg0, %c0_i32, %c0_i32_0, %c0_i32_1 : i32, i32, i32, i32
  }
  func.func @transform_1(%arg0: i32) -> (i32, i32, i32) {
    %c0_i32 = arith.constant 0 : i32
    %c0_i32_0 = arith.constant 0 : i32
    %c0_i32_1 = arith.constant 0 : i32
    %c0_i32_2 = arith.constant 0 : i32
    return %c0_i32, %c0_i32_0, %c0_i32_1 : i32, i32, i32
  }
  func.func @transform_2(%arg0: i32) -> (i32, i32) {
    %c0_i32 = arith.constant 0 : i32
    %c0_i32_0 = arith.constant 0 : i32
    %c0_i32_1 = arith.constant 0 : i32
    return %c0_i32, %c0_i32_0 : i32, i32
  }
  func.func @transform_3(%arg0: i32) -> (i32, i32, i32) {
    %c0_i32 = arith.constant 0 : i32
    %c0_i32_0 = arith.constant 0 : i32
    %c0_i32_1 = arith.constant 0 : i32
    return %arg0, %c0_i32, %c0_i32_0 : i32, i32, i32
  }
}

</mosaic_0001>

<llo_original>
// kernel: probe_forward.1
$region0: #{probe_forward.1}
  #allocation0 [shape = 'u32[]', space=smem, size = 0x4, offset = 0x4, fixed_abs, tag = 'smem constant byte address 0x4 - core index']
  #allocation1 [shape = 'u32[144,128]{1,0:T(1,128)}', space=vmem, size = 0x12000, scoped, tag = 'internal scratch']
  #allocation2 [shape = 'f32[1,4,10,16]{3,2,1,0:T(8,128)}', space=vmem, size = 0x8000, scoped, tag = 'scratch operand']
  %s0 = inlined_call_operand.hbm [shape: f32[2,4,16,16], index: 0, kind: input, shape index: {}]
  %s1 = inlined_call_operand.vmem [shape: f32[4,8,10], index: 1, kind: input, shape index: {}]
  %s2 = inlined_call_operand.vmem [shape: f32[8,1], index: 2, kind: input, shape index: {}]
  %s3 = inlined_call_operand.hbm [shape: f32[2,8,16], index: 3, kind: output, shape index: {}]
  %s4 = sld [smem:[#allocation0]]
  $region49: #{probe_forward.1} parent=0
    _
  %s6 = ssub.s32 1, %s4
  %s7 = scalar_select 0, %s6, %s4
  $region1: #{probe_forward.1} parent=0
    #allocation3 [shape = 'u8[65536]{0}', space=vmem, size = 0x10000, scoped, tag = 'input window, operand 0']
    #allocation4 [shape = 's32[2]{0}', space=sflag, size = 0x8, scoped, tag = 'scoped memory for probe_forward.1']
    #allocation5 [shape = 's32[2]{0}', space=sflag, size = 0x8, scoped, tag = 'scoped memory for probe_forward.1']
    #allocation6 [shape = 'u8[8192]{0}', space=vmem, size = 0x2000, scoped, tag = 'output window, operand 0']
    %8 = vsyncpa [#allocation4], 0
    %s9 = scalar_lea.sflag [#allocation4], 1
    %10 = vsyncpa %s9, 0
    %11 = vsyncpa [#allocation5], 0
    %s12 = scalar_lea.sflag [#allocation5], 1
    %13 = vsyncpa %s12, 0
    loop: start=0, step=1, limit=4
    $region2: #{probe_forward.1} parent=1 // loop_pre_header
      _
    $region3: #{probe_forward.1} parent=1 // loop_header
      %s15 = sphi 0, %s19
      %p16 = scmp.ge.s32.totalorder %s15, 4
      %s25 = sphi 0, %s27
      %s28 = sphi 0, %s25
      %s29 = sphi 0, %s28
      %s45 = sphi 0, %s29
      %s49 = sphi 0, %s49
      %s51 = sphi 0, %s49
      %s52 = sphi 0, %s51
      %s66 = sphi 0, %s52
      %s70 = sphi 0, %s70
      %s72 = sphi 0, %s70
      %s73 = sphi 0, %s72
      %s87 = sphi 0, %s73
      %s93 = sphi 0, %s95
      %s96 = sphi 0, %s93
      %s97 = sphi 0, %s96
      %s113 = sphi 0, %s97
    $region4: #{probe_forward.1} parent=1 // loop_header_branch
      %18 = sbr.rel (%p16) target = $region8
    $region5: #{probe_forward.1} parent=1 // loop_body
      %s20 = ssub.s32 %s15, 1
      %s21 = ssub.s32 %s15, 2
      %s22 = sadd.s32 %s15, 1
      %s23 = ssub.s32 %s15, %s22
      %p24 = scmp.eq.s32.totalorder %s23, 0
      %s26 = sadd.s32 %s25, 1
      %s27 = scalar_select %p24, %s25, %s26
      %p30 = pneg %p24
      %p31 = scmp.eq.s32.totalorder %s15, 1
      %p32 = por %p30, %p31
      %p33 = scmp.ne.s32.totalorder %s25, %s28
      %p34 = scmp.eq.s32.totalorder %s15, 0
      %p35 = por %p33, %p34
      %p36 = scmp.ne.s32.totalorder %s25, %s28
      %p37 = scmp.eq.s32.totalorder %s20, 1
      %p38 = por %p36, %p37
      %p39 = scmp.ne.s32.totalorder %s28, %s29
      %p40 = scmp.eq.s32.totalorder %s20, 0
      %p41 = por %p39, %p40
      %p42 = scmp.ne.s32.totalorder %s28, %s29
      %p43 = scmp.eq.s32.totalorder %s21, 1
      %p44 = por %p42, %p43
      %p46 = scmp.ne.s32.totalorder %s29, %s45
      %p47 = scmp.eq.s32.totalorder %s21, 0
      %p48 = por %p46, %p47
      %s50 = sadd.s32 %s49, 1
      %p53 = scmp.eq.s32.totalorder %s15, 1
      %p54 = scmp.ne.s32.totalorder %s49, %s51
      %p55 = scmp.eq.s32.totalorder %s15, 0
      %p56 = por %p54, %p55
      %p57 = scmp.ne.s32.totalorder %s49, %s51
      %p58 = scmp.eq.s32.totalorder %s20, 1
      %p59 = por %p57, %p58
      %p60 = scmp.ne.s32.totalorder %s51, %s52
      %p61 = scmp.eq.s32.totalorder %s20, 0
      %p62 = por %p60, %p61
      %p63 = scmp.ne.s32.totalorder %s51, %s52
      %p64 = scmp.eq.s32.totalorder %s21, 1
      %p65 = por %p63, %p64
      %p67 = scmp.ne.s32.totalorder %s52, %s66
      %p68 = scmp.eq.s32.totalorder %s21, 0
      %p69 = por %p67, %p68
      %s71 = sadd.s32 %s70, 1
      %p74 = scmp.eq.s32.totalorder %s15, 1
      %p75 = scmp.ne.s32.totalorder %s70, %s72
      %p76 = scmp.eq.s32.totalorder %s15, 0
      %p77 = por %p75, %p76
      %p78 = scmp.ne.s32.totalorder %s70, %s72
      %p79 = scmp.eq.s32.totalorder %s20, 1
      %p80 = por %p78, %p79
      %p81 = scmp.ne.s32.totalorder %s72, %s73
      %p82 = scmp.eq.s32.totalorder %s20, 0
      %p83 = por %p81, %p82
      %p84 = scmp.ne.s32.totalorder %s72, %s73
      %p85 = scmp.eq.s32.totalorder %s21, 1
      %p86 = por %p84, %p85
      %p88 = scmp.ne.s32.totalorder %s73, %s87
      %p89 = scmp.eq.s32.totalorder %s21, 0
      %p90 = por %p88, %p89
      %s91 = ssub.s32 %s15, %s22
      %p92 = scmp.eq.s32.totalorder %s91, 0
      %s94 = sadd.s32 %s93, 1
      %s95 = scalar_select %p92, %s93, %s94
      %p98 = pneg %p92
      %p99 = scmp.eq.s32.totalorder %s15, 1
      %p100 = por %p98, %p99
      %p101 = scmp.ne.s32.totalorder %s93, %s96
      %p102 = scmp.eq.s32.totalorder %s15, 0
      %p103 = por %p101, %p102
      %p104 = scmp.ne.s32.totalorder %s93, %s96
      %p105 = scmp.eq.s32.totalorder %s20, 1
      %p106 = por %p104, %p105
      %p107 = scmp.ne.s32.totalorder %s96, %s97
      %p108 = scmp.eq.s32.totalorder %s20, 0
      %p109 = por %p107, %p108
      %p110 = scmp.ne.s32.totalorder %s96, %s97
      %p111 = scmp.eq.s32.totalorder %s21, 1
      %p112 = por %p110, %p111
      %p114 = scmp.ne.s32.totalorder %s97, %s113
      %p115 = scmp.eq.s32.totalorder %s21, 0
      %p116 = por %p114, %p115
      %p117 = scmp.le.s32.totalorder 1, %s15
      %p118 = scmp.lt.s32.totalorder %s15, 3
      %p119 = pnand %p117, %p118
      %p120 = pneg %p119
      // Predicated region
      $region9: #{probe_forward.1} parent=5 // pred_check
        _
      $region10: #{probe_forward.1} parent=5 // pred_check_branch
        %122 = sbr.rel (%p119) target = $region12
      $region11: #{probe_forward.1} parent=5 // pred_region
        %s123 = ssub.s32 %s15, 1
        // Predicated region
        $region13: #{probe_forward.1} parent=11 // pred_check
          %p124 = pneg %p62
        $region14: #{probe_forward.1} parent=11 // pred_check_branch
          %126 = sbr.rel (%p124) target = $region16
        $region15: #{probe_forward.1} parent=11 // pred_region
          _
        $region16: #{probe_forward.1} parent=11 // pred_fallthru
          _
        // Predicated region
        $region17: #{probe_forward.1} parent=11 // pred_check
          %p127 = pneg %p83
        $region18: #{probe_forward.1} parent=11 // pred_check_branch
          %129 = sbr.rel (%p127) target = $region20
        $region19: #{probe_forward.1} parent=11 // pred_region
          _
        $region20: #{probe_forward.1} parent=11 // pred_fallthru
          _
      $region12: #{probe_forward.1} parent=5 // pred_fallthru
        _
      %p130 = scmp.lt.s32.totalorder %s15, 2
      // Predicated region
      $region21: #{probe_forward.1} parent=5 // pred_check
        %p131 = pneg %p130
      $region22: #{probe_forward.1} parent=5 // pred_check_branch
        %133 = sbr.rel (%p131) target = $region24
      $region23: #{probe_forward.1} parent=5 // pred_region
        // Predicated region
        $region25: #{probe_forward.1} parent=23 // pred_check
          %p134 = pneg %p35
        $region26: #{probe_forward.1} parent=23 // pred_check_branch
          %136 = sbr.rel (%p134) target = $region28
        $region27: #{probe_forward.1} parent=23 // pred_region
          %s137 = sand.u32 %s25, 1
          %s138 = scalar_lea.sflag [#allocation4], %s137
          %s139 = sand.u32 %s25, 1
          %s140 = smul.addr %s139, 64
          %s141 = scalar_lea.vmem [#allocation3], %s140
          %s143 = ssub.s32 1024, 1024
          %144 = vsyncadd %s138, %s143
          %s145 = smul.addr %s15, 8
          %s146 = smul.addr %s145, 128
          %s147 = scalar_lea.hbm %s0, %s146
          %s148 = sshll.u32 %s141, 4
          %s149 = int_to_ptr.vmem [resolvable:$true] %s148
          %154 = dma.hbm_to_vmem [thread:$0]  %s147, 1024, %s149, %s138, 128, 128, 8
        $region28: #{probe_forward.1} parent=23 // pred_fallthru
          _
      $region24: #{probe_forward.1} parent=5 // pred_fallthru
        _
      %p155 = scmp.le.s32.totalorder 1, %s15
      %p156 = scmp.lt.s32.totalorder %s15, 3
      %p157 = pnand %p155, %p156
      %p158 = pneg %p157
      // Predicated region
      $region29: #{probe_forward.1} parent=5 // pred_check
        _
      $region30: #{probe_forward.1} parent=5 // pred_check_branch
        %160 = sbr.rel (%p157) target = $region32
      $region31: #{probe_forward.1} parent=5 // pred_region
        %s161 = ssub.s32 %s15, 1
        %s162 = sand.u32 %s28, 1
        %s163 = scalar_lea.sflag [#allocation4], %s162
        %s164 = sand.u32 %s28, 1
        %s165 = smul.addr %s164, 64
        %s166 = scalar_lea.vmem [#allocation3], %s165
        // Predicated region
        $region33: #{probe_forward.1} parent=31 // pred_check
          %p167 = pneg %p41
        $region34: #{probe_forward.1} parent=31 // pred_check_branch
          %169 = sbr.rel (%p167) target = $region36
        $region35: #{probe_forward.1} parent=31 // pred_region
          %170 = dma.done %s163, 1024
        $region36: #{probe_forward.1} parent=31 // pred_fallthru
          _
        %s171 = sand.u32 %s28, 1
        %s172 = scalar_lea.sflag [#allocation4], %s171
        %s173 = sand.u32 %s28, 1
        %s174 = smul.addr %s173, 64
        %s175 = scalar_lea.vmem [#allocation3], %s174
        %p176 = pneg %p41
        %p177 = pneg %p38
        %p178 = pneg %p62
        %p179 = pneg %p59
        %p180 = pneg %p83
        %p181 = pneg %p80
        %p182 = pneg %p109
        %p183 = pneg %p106
        %s184 = sand.u32 %s96, 1
        %s185 = scalar_lea.sflag [#allocation5], %s184
        %s186 = sand.u32 %s96, 1
        %s187 = smul.addr %s186, 8
        %s188 = scalar_lea.vmem [#allocation6], %s187
        %v189 = vld [vmem:[%s166] sm:$0xff]
        %v190 = vld [vmem:[%s166 + $0x8] sm:$0xff]
        %v191 = vld [vmem:[%s166 + $0x10] sm:$0xff]
        %v192 = vld [vmem:[%s166 + $0x18] sm:$0xff]
        %v193 = vld [vmem:[%s166 + $0x20] sm:$0xff]
        %v194 = vld [vmem:[%s166 + $0x28] sm:$0xff]
        %v195 = vld [vmem:[%s166 + $0x30] sm:$0xff]
        %v196 = vld [vmem:[%s166 + $0x38] sm:$0xff]
        %v197 = vlaneseq
        %v198 = vshrl.u32 %v197, 7
        %v199 = vadd.s32 %v198, 8
        %vm200 = vcmask 130048
        %v201 = vsel %vm200, %v189, -inf
        %v202 = vsel %vm200, %v190, -inf
        %v203 = vmax.f32 %v201, %v202
        %v204 = vrot.slane %v203, 4
        %v205 = vmax.f32 %v203, %v204
        %v206 = vrot.slane %v205, 2
        %v207 = vmax.f32 %v205, %v206
        %v208 = vrot.slane %v207, 1
        %v209 = vmax.f32 %v207, %v208
        %v210 = vsel %vm200, %v191, -inf
        %v211 = vsel %vm200, %v192, -inf
        %v212 = vmax.f32 %v210, %v211
        %v213 = vrot.slane %v212, 4
        %v214 = vmax.f32 %v212, %v213
        %v215 = vrot.slane %v214, 2
        %v216 = vmax.f32 %v214, %v215
        %v217 = vrot.slane %v216, 1
        %v218 = vmax.f32 %v216, %v217
        %v219 = vsel %vm200, %v193, -inf
        %v220 = vsel %vm200, %v194, -inf
        %v221 = vmax.f32 %v219, %v220
        %v222 = vrot.slane %v221, 4
        %v223 = vmax.f32 %v221, %v222
        %v224 = vrot.slane %v223, 2
        %v225 = vmax.f32 %v223, %v224
        %v226 = vrot.slane %v225, 1
        %v227 = vmax.f32 %v225, %v226
        %v228 = vsel %vm200, %v195, -inf
        %v229 = vsel %vm200, %v196, -inf
        %v230 = vmax.f32 %v228, %v229
        %v231 = vrot.slane %v230, 4
        %v232 = vmax.f32 %v230, %v231
        %v233 = vrot.slane %v232, 2
        %v234 = vmax.f32 %v232, %v233
        %v235 = vrot.slane %v234, 1
        %v236 = vmax.f32 %v234, %v235
        %vm237 = vcmask 122880
        %238 = vst.msk [vmem:[#allocation2] sm:$0x1] %vm237, %v209
        %239 = vst.msk [vmem:[#allocation2 + $0x10] sm:$0x1] %vm237, %v218
        %240 = vst.msk [vmem:[#allocation2 + $0x20] sm:$0x1] %vm237, %v227
        %241 = vst.msk [vmem:[#allocation2 + $0x30] sm:$0x1] %vm237, %v236
        %vm242 = vcmp.eq.f32.partialorder %v189, %v209
        %vm243 = vcmp.eq.f32.partialorder %v190, %v209
        %vm244 = vcmp.eq.f32.partialorder %v191, %v218
        %vm245 = vcmp.eq.f32.partialorder %v192, %v218
        %vm246 = vcmp.eq.f32.partialorder %v193, %v227
        %vm247 = vcmp.eq.f32.partialorder %v194, %v227
        %vm248 = vcmp.eq.f32.partialorder %v195, %v236
        %vm249 = vcmp.eq.f32.partialorder %v196, %v236
        %v250 = vsel %vm242, %v198, 16
        %v251 = vsel %vm243, %v199, 16
        %v252 = vsel %vm244, %v198, 16
        %v253 = vsel %vm245, %v199, 16
        %v254 = vsel %vm246, %v198, 16
        %v255 = vsel %vm247, %v199, 16
        %v256 = vsel %vm248, %v198, 16
        %v257 = vsel %vm249, %v199, 16
        %v258 = vsel %vm200, %v250, 2147483647
        %v259 = vsel %vm200, %v251, 2147483647
        %vm260 = vcmp.lt.s32.totalorder %v258, %v259
        %v261 = vsel %vm260, %v258, %v259
        %v262 = vrot.slane %v261, 4
        %vm263 = vcmp.lt.s32.totalorder %v261, %v262
        %v264 = vsel %vm263, %v261, %v262
        %v265 = vrot.slane %v264, 2
        %vm266 = vcmp.lt.s32.totalorder %v264, %v265
        %v267 = vsel %vm266, %v264, %v265
        %v268 = vrot.slane %v267, 1
        %vm269 = vcmp.lt.s32.totalorder %v267, %v268
        %v270 = vsel %vm269, %v267, %v268
        %v271 = vsel %vm200, %v252, 2147483647
        %v272 = vsel %vm200, %v253, 2147483647
        %vm273 = vcmp.lt.s32.totalorder %v271, %v272
        %v274 = vsel %vm273, %v271, %v272
        %v275 = vrot.slane %v274, 4
        %vm276 = vcmp.lt.s32.totalorder %v274, %v275
        %v277 = vsel %vm276, %v274, %v275
        %v278 = vrot.slane %v277, 2
        %vm279 = vcmp.lt.s32.totalorder %v277, %v278
        %v280 = vsel %vm279, %v277, %v278
        %v281 = vrot.slane %v280, 1
        %vm282 = vcmp.lt.s32.totalorder %v280, %v281
        %v283 = vsel %vm282, %v280, %v281
        %v284 = vsel %vm200, %v254, 2147483647
        %v285 = vsel %vm200, %v255, 2147483647
        %vm286 = vcmp.lt.s32.totalorder %v284, %v285
        %v287 = vsel %vm286, %v284, %v285
        %v288 = vrot.slane %v287, 4
        %vm289 = vcmp.lt.s32.totalorder %v287, %v288
        %v290 = vsel %vm289, %v287, %v288
        %v291 = vrot.slane %v290, 2
        %vm292 = vcmp.lt.s32.totalorder %v290, %v291
        %v293 = vsel %vm292, %v290, %v291
        %v294 = vrot.slane %v293, 1
        %vm295 = vcmp.lt.s32.totalorder %v293, %v294
        %v296 = vsel %vm295, %v293, %v294
        %v297 = vsel %vm200, %v256, 2147483647
        %v298 = vsel %vm200, %v257, 2147483647
        %vm299 = vcmp.lt.s32.totalorder %v297, %v298
        %v300 = vsel %vm299, %v297, %v298
        %v301 = vrot.slane %v300, 4
        %vm302 = vcmp.lt.s32.totalorder %v300, %v301
        %v303 = vsel %vm302, %v300, %v301
        %v304 = vrot.slane %v303, 2
        %vm305 = vcmp.lt.s32.totalorder %v303, %v304
        %v306 = vsel %vm305, %v303, %v304
        %v307 = vrot.slane %v306, 1
        %vm308 = vcmp.lt.s32.totalorder %v306, %v307
        %v309 = vsel %vm308, %v306, %v307
        %vm310 = vcmp.eq.s32.totalorder %v198, %v270
        %vm311 = vcmp.eq.s32.totalorder %v199, %v270
        %vm312 = vcmp.eq.s32.totalorder %v198, %v283
        %vm313 = vcmp.eq.s32.totalorder %v199, %v283
        %vm314 = vcmp.eq.s32.totalorder %v198, %v296
        %vm315 = vcmp.eq.s32.totalorder %v199, %v296
        %vm316 = vcmp.eq.s32.totalorder %v198, %v309
        %vm317 = vcmp.eq.s32.totalorder %v199, %v309
        %v318 = vsel %vm310, -inf, %v189
        %v319 = vsel %vm311, -inf, %v190
        %v320 = vsel %vm312, -inf, %v191
        %v321 = vsel %vm313, -inf, %v192
        %v322 = vsel %vm314, -inf, %v193
        %v323 = vsel %vm315, -inf, %v194
        %v324 = vsel %vm316, -inf, %v195
        %v325 = vsel %vm317, -inf, %v196
        %v326 = vsel %vm200, %v318, -inf
        %v327 = vsel %vm200, %v319, -inf
        %v328 = vmax.f32 %v326, %v327
        %v329 = vrot.slane %v328, 4
        %v330 = vmax.f32 %v328, %v329
        %v331 = vrot.slane %v330, 2
        %v332 = vmax.f32 %v330, %v331
        %v333 = vrot.slane %v332, 1
        %v334 = vmax.f32 %v332, %v333
        %v335 = vsel %vm200, %v320, -inf
        %v336 = vsel %vm200, %v321, -inf
        %v337 = vmax.f32 %v335, %v336
        %v338 = vrot.slane %v337, 4
        %v339 = vmax.f32 %v337, %v338
        %v340 = vrot.slane %v339, 2
        %v341 = vmax.f32 %v339, %v340
        %v342 = vrot.slane %v341, 1
        %v343 = vmax.f32 %v341, %v342
        %v344 = vsel %vm200, %v322, -inf
        %v345 = vsel %vm200, %v323, -inf
        %v346 = vmax.f32 %v344, %v345
        %v347 = vrot.slane %v346, 4
        %v348 = vmax.f32 %v346, %v347
        %v349 = vrot.slane %v348, 2
        %v350 = vmax.f32 %v348, %v349
        %v351 = vrot.slane %v350, 1
        %v352 = vmax.f32 %v350, %v351
        %v353 = vsel %vm200, %v324, -inf
        %v354 = vsel %vm200, %v325, -inf
        %v355 = vmax.f32 %v353, %v354
        %v356 = vrot.slane %v355, 4
        %v357 = vmax.f32 %v355, %v356
        %v358 = vrot.slane %v357, 2
        %v359 = vmax.f32 %v357, %v358
        %v360 = vrot.slane %v359, 1
        %v361 = vmax.f32 %v359, %v360
        %362 = vst.msk [vmem:[#allocation2 + $0x1] sm:$0x1] %vm237, %v334
        %363 = vst.msk [vmem:[#allocation2 + $0x11] sm:$0x1] %vm237, %v343
        %364 = vst.msk [vmem:[#allocation2 + $0x21] sm:$0x1] %vm237, %v352
        %365 = vst.msk [vmem:[#allocation2 + $0x31] sm:$0x1] %vm237, %v361
        %vm366 = vcmp.eq.f32.partialorder %v318, %v334
        %vm367 = vcmp.eq.f32.partialorder %v319, %v334
        %vm368 = vcmp.eq.f32.partialorder %v320, %v343
        %vm369 = vcmp.eq.f32.partialorder %v321, %v343
        %vm370 = vcmp.eq.f32.partialorder %v322, %v352
        %vm371 = vcmp.eq.f32.partialorder %v323, %v352
        %vm372 = vcmp.eq.f32.partialorder %v324, %v361
        %vm373 = vcmp.eq.f32.partialorder %v325, %v361
        %v374 = vsel %vm366, %v198, 16
        %v375 = vsel %vm367, %v199, 16
        %v376 = vsel %vm368, %v198, 16
        %v377 = vsel %vm369, %v199, 16
        %v378 = vsel %vm370, %v198, 16
        %v379 = vsel %vm371, %v199, 16
        %v380 = vsel %vm372, %v198, 16
        %v381 = vsel %vm373, %v199, 16
        %v382 = vsel %vm200, %v374, 2147483647
        %v383 = vsel %vm200, %v375, 2147483647
        %vm384 = vcmp.lt.s32.totalorder %v382, %v383
        %v385 = vsel %vm384, %v382, %v383
        %v386 = vrot.slane %v385, 4
        %vm387 = vcmp.lt.s32.totalorder %v385, %v386
        %v388 = vsel %vm387, %v385, %v386
        %v389 = vrot.slane %v388, 2
        %vm390 = vcmp.lt.s32.totalorder %v388, %v389
        %v391 = vsel %vm390, %v388, %v389
        %v392 = vrot.slane %v391, 1
        %vm393 = vcmp.lt.s32.totalorder %v391, %v392
        %v394 = vsel %vm393, %v391, %v392
        %v395 = vsel %vm200, %v376, 2147483647
        %v396 = vsel %vm200, %v377, 2147483647
        %vm397 = vcmp.lt.s32.totalorder %v395, %v396
        %v398 = vsel %vm397, %v395, %v396
        %v399 = vrot.slane %v398, 4
        %vm400 = vcmp.lt.s32.totalorder %v398, %v399
        %v401 = vsel %vm400, %v398, %v399
        %v402 = vrot.slane %v401, 2
        %vm403 = vcmp.lt.s32.totalorder %v401, %v402
        %v404 = vsel %vm403, %v401, %v402
        %v405 = vrot.slane %v404, 1
        %vm406 = vcmp.lt.s32.totalorder %v404, %v405
        %v407 = vsel %vm406, %v404, %v405
        %v408 = vsel %vm200, %v378, 2147483647
        %v409 = vsel %vm200, %v379, 2147483647
        %vm410 = vcmp.lt.s32.totalorder %v408, %v409
        %v411 = vsel %vm410, %v408, %v409
        %v412 = vrot.slane %v411, 4
        %vm413 = vcmp.lt.s32.totalorder %v411, %v412
        %v414 = vsel %vm413, %v411, %v412
        %v415 = vrot.slane %v414, 2
        %vm416 = vcmp.lt.s32.totalorder %v414, %v415
        %v417 = vsel %vm416, %v414, %v415
        %v418 = vrot.slane %v417, 1
        %vm419 = vcmp.lt.s32.totalorder %v417, %v418
        %v420 = vsel %vm419, %v417, %v418
        %v421 = vsel %vm200, %v380, 2147483647
        %v422 = vsel %vm200, %v381, 2147483647
        %vm423 = vcmp.lt.s32.totalorder %v421, %v422
        %v424 = vsel %vm423, %v421, %v422
        %v425 = vrot.slane %v424, 4
        %vm426 = vcmp.lt.s32.totalorder %v424, %v425
        %v427 = vsel %vm426, %v424, %v425
        %v428 = vrot.slane %v427, 2
        %vm429 = vcmp.lt.s32.totalorder %v427, %v428
        %v430 = vsel %vm429, %v427, %v428
        %v431 = vrot.slane %v430, 1
        %vm432 = vcmp.lt.s32.totalorder %v430, %v431
        %v433 = vsel %vm432, %v430, %v431
        %vm434 = vcmp.eq.s32.totalorder %v198, %v394
        %vm435 = vcmp.eq.s32.totalorder %v199, %v394
        %vm436 = vcmp.eq.s32.totalorder %v198, %v407
        %vm437 = vcmp.eq.s32.totalorder %v199, %v407
        %vm438 = vcmp.eq.s32.totalorder %v198, %v420
        %vm439 = vcmp.eq.s32.totalorder %v199, %v420
        %vm440 = vcmp.eq.s32.totalorder %v198, %v433
        %vm441 = vcmp.eq.s32.totalorder %v199, %v433
        %v442 = vsel %vm434, -inf, %v318
        %v443 = vsel %vm435, -inf, %v319
        %v444 = vsel %vm436, -inf, %v320
        %v445 = vsel %vm437, -inf, %v321
        %v446 = vsel %vm438, -inf, %v322
        %v447 = vsel %vm439, -inf, %v323
        %v448 = vsel %vm440, -inf, %v324
        %v449 = vsel %vm441, -inf, %v325
        %v450 = vsel %vm200, %v442, -inf
        %v451 = vsel %vm200, %v443, -inf
        %v452 = vmax.f32 %v450, %v451
        %v453 = vrot.slane %v452, 4
        %v454 = vmax.f32 %v452, %v453
        %v455 = vrot.slane %v454, 2
        %v456 = vmax.f32 %v454, %v455
        %v457 = vrot.slane %v456, 1
        %v458 = vmax.f32 %v456, %v457
        %v459 = vsel %vm200, %v444, -inf
        %v460 = vsel %vm200, %v445, -inf
        %v461 = vmax.f32 %v459, %v460
        %v462 = vrot.slane %v461, 4
        %v463 = vmax.f32 %v461, %v462
        %v464 = vrot.slane %v463, 2
        %v465 = vmax.f32 %v463, %v464
        %v466 = vrot.slane %v465, 1
        %v467 = vmax.f32 %v465, %v466
        %v468 = vsel %vm200, %v446, -inf
        %v469 = vsel %vm200, %v447, -inf
        %v470 = vmax.f32 %v468, %v469
        %v471 = vrot.slane %v470, 4
        %v472 = vmax.f32 %v470, %v471
        %v473 = vrot.slane %v472, 2
        %v474 = vmax.f32 %v472, %v473
        %v475 = vrot.slane %v474, 1
        %v476 = vmax.f32 %v474, %v475
        %v477 = vsel %vm200, %v448, -inf
        %v478 = vsel %vm200, %v449, -inf
        %v479 = vmax.f32 %v477, %v478
        %v480 = vrot.slane %v479, 4
        %v481 = vmax.f32 %v479, %v480
        %v482 = vrot.slane %v481, 2
        %v483 = vmax.f32 %v481, %v482
        %v484 = vrot.slane %v483, 1
        %v485 = vmax.f32 %v483, %v484
        %486 = vst.msk [vmem:[#allocation2 + $0x2] sm:$0x1] %vm237, %v458
        %487 = vst.msk [vmem:[#allocation2 + $0x12] sm:$0x1] %vm237, %v467
        %488 = vst.msk [vmem:[#allocation2 + $0x22] sm:$0x1] %vm237, %v476
        %489 = vst.msk [vmem:[#allocation2 + $0x32] sm:$0x1] %vm237, %v485
        %vm490 = vcmp.eq.f32.partialorder %v442, %v458
        %vm491 = vcmp.eq.f32.partialorder %v443, %v458
        %vm492 = vcmp.eq.f32.partialorder %v444, %v467
        %vm493 = vcmp.eq.f32.partialorder %v445, %v467
        %vm494 = vcmp.eq.f32.partialorder %v446, %v476
        %vm495 = vcmp.eq.f32.partialorder %v447, %v476
        %vm496 = vcmp.eq.f32.partialorder %v448, %v485
        %vm497 = vcmp.eq.f32.partialorder %v449, %v485
        %v498 = vsel %vm490, %v198, 16
        %v499 = vsel %vm491, %v199, 16
        %v500 = vsel %vm492, %v198, 16
        %v501 = vsel %vm493, %v199, 16
        %v502 = vsel %vm494, %v198, 16
        %v503 = vsel %vm495, %v199, 16
        %v504 = vsel %vm496, %v198, 16
        %v505 = vsel %vm497, %v199, 16
        %v506 = vsel %vm200, %v498, 2147483647
        %v507 = vsel %vm200, %v499, 2147483647
        %vm508 = vcmp.lt.s32.totalorder %v506, %v507
        %v509 = vsel %vm508, %v506, %v507
        %v510 = vrot.slane %v509, 4
        %vm511 = vcmp.lt.s32.totalorder %v509, %v510
        %v512 = vsel %vm511, %v509, %v510
        %v513 = vrot.slane %v512, 2
        %vm514 = vcmp.lt.s32.totalorder %v512, %v513
        %v515 = vsel %vm514, %v512, %v513
        %v516 = vrot.slane %v515, 1
        %vm517 = vcmp.lt.s32.totalorder %v515, %v516
        %v518 = vsel %vm517, %v515, %v516
        %v519 = vsel %vm200, %v500, 2147483647
        %v520 = vsel %vm200, %v501, 2147483647
        %vm521 = vcmp.lt.s32.totalorder %v519, %v520
        %v522 = vsel %vm521, %v519, %v520
        %v523 = vrot.slane %v522, 4
        %vm524 = vcmp.lt.s32.totalorder %v522, %v523
        %v525 = vsel %vm524, %v522, %v523
        %v526 = vrot.slane %v525, 2
        %vm527 = vcmp.lt.s32.totalorder %v525, %v526
        %v528 = vsel %vm527, %v525, %v526
        %v529 = vrot.slane %v528, 1
        %vm530 = vcmp.lt.s32.totalorder %v528, %v529
        %v531 = vsel %vm530, %v528, %v529
        %v532 = vsel %vm200, %v502, 2147483647
        %v533 = vsel %vm200, %v503, 2147483647
        %vm534 = vcmp.lt.s32.totalorder %v532, %v533
        %v535 = vsel %vm534, %v532, %v533
        %v536 = vrot.slane %v535, 4
        %vm537 = vcmp.lt.s32.totalorder %v535, %v536
        %v538 = vsel %vm537, %v535, %v536
        %v539 = vrot.slane %v538, 2
        %vm540 = vcmp.lt.s32.totalorder %v538, %v539
        %v541 = vsel %vm540, %v538, %v539
        %v542 = vrot.slane %v541, 1
        %vm543 = vcmp.lt.s32.totalorder %v541, %v542
        %v544 = vsel %vm543, %v541, %v542
        %v545 = vsel %vm200, %v504, 2147483647
        %v546 = vsel %vm200, %v505, 2147483647
        %vm547 = vcmp.lt.s32.totalorder %v545, %v546
        %v548 = vsel %vm547, %v545, %v546
        %v549 = vrot.slane %v548, 4
        %vm550 = vcmp.lt.s32.totalorder %v548, %v549
        %v551 = vsel %vm550, %v548, %v549
        %v552 = vrot.slane %v551, 2
        %vm553 = vcmp.lt.s32.totalorder %v551, %v552
        %v554 = vsel %vm553, %v551, %v552
        %v555 = vrot.slane %v554, 1
        %vm556 = vcmp.lt.s32.totalorder %v554, %v555
        %v557 = vsel %vm556, %v554, %v555
        %vm558 = vcmp.eq.s32.totalorder %v198, %v518
        %vm559 = vcmp.eq.s32.totalorder %v199, %v518
        %vm560 = vcmp.eq.s32.totalorder %v198, %v531
        %vm561 = vcmp.eq.s32.totalorder %v199, %v531
        %vm562 = vcmp.eq.s32.totalorder %v198, %v544
        %vm563 = vcmp.eq.s32.totalorder %v199, %v544
        %vm564 = vcmp.eq.s32.totalorder %v198, %v557
        %vm565 = vcmp.eq.s32.totalorder %v199, %v557
        %v566 = vsel %vm558, -inf, %v442
        %v567 = vsel %vm559, -inf, %v443
        %v568 = vsel %vm560, -inf, %v444
        %v569 = vsel %vm561, -inf, %v445
        %v570 = vsel %vm562, -inf, %v446
        %v571 = vsel %vm563, -inf, %v447
        %v572 = vsel %vm564, -inf, %v448
        %v573 = vsel %vm565, -inf, %v449
        %v574 = vsel %vm200, %v566, -inf
        %v575 = vsel %vm200, %v567, -inf
        %v576 = vmax.f32 %v574, %v575
        %v577 = vrot.slane %v576, 4
        %v578 = vmax.f32 %v576, %v577
        %v579 = vrot.slane %v578, 2
        %v580 = vmax.f32 %v578, %v579
        %v581 = vrot.slane %v580, 1
        %v582 = vmax.f32 %v580, %v581
        %v583 = vsel %vm200, %v568, -inf
        %v584 = vsel %vm200, %v569, -inf
        %v585 = vmax.f32 %v583, %v584
        %v586 = vrot.slane %v585, 4
        %v587 = vmax.f32 %v585, %v586
        %v588 = vrot.slane %v587, 2
        %v589 = vmax.f32 %v587, %v588
        %v590 = vrot.slane %v589, 1
        %v591 = vmax.f32 %v589, %v590
        %v592 = vsel %vm200, %v570, -inf
        %v593 = vsel %vm200, %v571, -inf
        %v594 = vmax.f32 %v592, %v593
        %v595 = vrot.slane %v594, 4
        %v596 = vmax.f32 %v594, %v595
        %v597 = vrot.slane %v596, 2
        %v598 = vmax.f32 %v596, %v597
        %v599 = vrot.slane %v598, 1
        %v600 = vmax.f32 %v598, %v599
        %v601 = vsel %vm200, %v572, -inf
        %v602 = vsel %vm200, %v573, -inf
        %v603 = vmax.f32 %v601, %v602
        %v604 = vrot.slane %v603, 4
        %v605 = vmax.f32 %v603, %v604
        %v606 = vrot.slane %v605, 2
        %v607 = vmax.f32 %v605, %v606
        %v608 = vrot.slane %v607, 1
        %v609 = vmax.f32 %v607, %v608
        %610 = vst.msk [vmem:[#allocation2 + $0x3] sm:$0x1] %vm237, %v582
        %611 = vst.msk [vmem:[#allocation2 + $0x13] sm:$0x1] %vm237, %v591
        %612 = vst.msk [vmem:[#allocation2 + $0x23] sm:$0x1] %vm237, %v600
        %613 = vst.msk [vmem:[#allocation2 + $0x33] sm:$0x1] %vm237, %v609
        %vm614 = vcmp.eq.f32.partialorder %v566, %v582
        %vm615 = vcmp.eq.f32.partialorder %v567, %v582
        %vm616 = vcmp.eq.f32.partialorder %v568, %v591
        %vm617 = vcmp.eq.f32.partialorder %v569, %v591
        %vm618 = vcmp.eq.f32.partialorder %v570, %v600
        %vm619 = vcmp.eq.f32.partialorder %v571, %v600
        %vm620 = vcmp.eq.f32.partialorder %v572, %v609
        %vm621 = vcmp.eq.f32.partialorder %v573, %v609
        %v622 = vsel %vm614, %v198, 16
        %v623 = vsel %vm615, %v199, 16
        %v624 = vsel %vm616, %v198, 16
        %v625 = vsel %vm617, %v199, 16
        %v626 = vsel %vm618, %v198, 16
        %v627 = vsel %vm619, %v199, 16
        %v628 = vsel %vm620, %v198, 16
        %v629 = vsel %vm621, %v199, 16
        %v630 = vsel %vm200, %v622, 2147483647
        %v631 = vsel %vm200, %v623, 2147483647
        %vm632 = vcmp.lt.s32.totalorder %v630, %v631
        %v633 = vsel %vm632, %v630, %v631
        %v634 = vrot.slane %v633, 4
        %vm635 = vcmp.lt.s32.totalorder %v633, %v634
        %v636 = vsel %vm635, %v633, %v634
        %v637 = vrot.slane %v636, 2
        %vm638 = vcmp.lt.s32.totalorder %v636, %v637
        %v639 = vsel %vm638, %v636, %v637
        %v640 = vrot.slane %v639, 1
        %vm641 = vcmp.lt.s32.totalorder %v639, %v640
        %v642 = vsel %vm641, %v639, %v640
        %v643 = vsel %vm200, %v624, 2147483647
        %v644 = vsel %vm200, %v625, 2147483647
        %vm645 = vcmp.lt.s32.totalorder %v643, %v644
        %v646 = vsel %vm645, %v643, %v644
        %v647 = vrot.slane %v646, 4
        %vm648 = vcmp.lt.s32.totalorder %v646, %v647
        %v649 = vsel %vm648, %v646, %v647
        %v650 = vrot.slane %v649, 2
        %vm651 = vcmp.lt.s32.totalorder %v649, %v650
        %v652 = vsel %vm651, %v649, %v650
        %v653 = vrot.slane %v652, 1
        %vm654 = vcmp.lt.s32.totalorder %v652, %v653
        %v655 = vsel %vm654, %v652, %v653
        %v656 = vsel %vm200, %v626, 2147483647
        %v657 = vsel %vm200, %v627, 2147483647
        %vm658 = vcmp.lt.s32.totalorder %v656, %v657
        %v659 = vsel %vm658, %v656, %v657
        %v660 = vrot.slane %v659, 4
        %vm661 = vcmp.lt.s32.totalorder %v659, %v660
        %v662 = vsel %vm661, %v659, %v660
        %v663 = vrot.slane %v662, 2
        %vm664 = vcmp.lt.s32.totalorder %v662, %v663
        %v665 = vsel %vm664, %v662, %v663
        %v666 = vrot.slane %v665, 1
        %vm667 = vcmp.lt.s32.totalorder %v665, %v666
        %v668 = vsel %vm667, %v665, %v666
        %v669 = vsel %vm200, %v628, 2147483647
        %v670 = vsel %vm200, %v629, 2147483647
        %vm671 = vcmp.lt.s32.totalorder %v669, %v670
        %v672 = vsel %vm671, %v669, %v670
        %v673 = vrot.slane %v672, 4
        %vm674 = vcmp.lt.s32.totalorder %v672, %v673
        %v675 = vsel %vm674, %v672, %v673
        %v676 = vrot.slane %v675, 2
        %vm677 = vcmp.lt.s32.totalorder %v675, %v676
        %v678 = vsel %vm677, %v675, %v676
        %v679 = vrot.slane %v678, 1
        %vm680 = vcmp.lt.s32.totalorder %v678, %v679
        %v681 = vsel %vm680, %v678, %v679
        %vm682 = vcmp.eq.s32.totalorder %v198, %v642
        %vm683 = vcmp.eq.s32.totalorder %v199, %v642
        %vm684 = vcmp.eq.s32.totalorder %v198, %v655
        %vm685 = vcmp.eq.s32.totalorder %v199, %v655
        %vm686 = vcmp.eq.s32.totalorder %v198, %v668
        %vm687 = vcmp.eq.s32.totalorder %v199, %v668
        %vm688 = vcmp.eq.s32.totalorder %v198, %v681
        %vm689 = vcmp.eq.s32.totalorder %v199, %v681
        %v690 = vsel %vm682, -inf, %v566
        %v691 = vsel %vm683, -inf, %v567
        %v692 = vsel %vm684, -inf, %v568
        %v693 = vsel %vm685, -inf, %v569
        %v694 = vsel %vm686, -inf, %v570
        %v695 = vsel %vm687, -inf, %v571
        %v696 = vsel %vm688, -inf, %v572
        %v697 = vsel %vm689, -inf, %v573
        %v698 = vsel %vm200, %v690, -inf
        %v699 = vsel %vm200, %v691, -inf
        %v700 = vmax.f32 %v698, %v699
        %v701 = vrot.slane %v700, 4
        %v702 = vmax.f32 %v700, %v701
        %v703 = vrot.slane %v702, 2
        %v704 = vmax.f32 %v702, %v703
        %v705 = vrot.slane %v704, 1
        %v706 = vmax.f32 %v704, %v705
        %v707 = vsel %vm200, %v692, -inf
        %v708 = vsel %vm200, %v693, -inf
        %v709 = vmax.f32 %v707, %v708
        %v710 = vrot.slane %v709, 4
        %v711 = vmax.f32 %v709, %v710
        %v712 = vrot.slane %v711, 2
        %v713 = vmax.f32 %v711, %v712
        %v714 = vrot.slane %v713, 1
        %v715 = vmax.f32 %v713, %v714
        %v716 = vsel %vm200, %v694, -inf
        %v717 = vsel %vm200, %v695, -inf
        %v718 = vmax.f32 %v716, %v717
        %v719 = vrot.slane %v718, 4
        %v720 = vmax.f32 %v718, %v719
        %v721 = vrot.slane %v720, 2
        %v722 = vmax.f32 %v720, %v721
        %v723 = vrot.slane %v722, 1
        %v724 = vmax.f32 %v722, %v723
        %v725 = vsel %vm200, %v696, -inf
        %v726 = vsel %vm200, %v697, -inf
        %v727 = vmax.f32 %v725, %v726
        %v728 = vrot.slane %v727, 4
        %v729 = vmax.f32 %v727, %v728
        %v730 = vrot.slane %v729, 2
        %v731 = vmax.f32 %v729, %v730
        %v732 = vrot.slane %v731, 1
        %v733 = vmax.f32 %v731, %v732
        %734 = vst.msk [vmem:[#allocation2 + $0x4] sm:$0x1] %vm237, %v706
        %735 = vst.msk [vmem:[#allocation2 + $0x14] sm:$0x1] %vm237, %v715
        %736 = vst.msk [vmem:[#allocation2 + $0x24] sm:$0x1] %vm237, %v724
        %737 = vst.msk [vmem:[#allocation2 + $0x34] sm:$0x1] %vm237, %v733
        %vm738 = vcmp.eq.f32.partialorder %v690, %v706
        %vm739 = vcmp.eq.f32.partialorder %v691, %v706
        %vm740 = vcmp.eq.f32.partialorder %v692, %v715
        %vm741 = vcmp.eq.f32.partialorder %v693, %v715
        %vm742 = vcmp.eq.f32.partialorder %v694, %v724
        %vm743 = vcmp.eq.f32.partialorder %v695, %v724
        %vm744 = vcmp.eq.f32.partialorder %v696, %v733
        %vm745 = vcmp.eq.f32.partialorder %v697, %v733
        %v746 = vsel %vm738, %v198, 16
        %v747 = vsel %vm739, %v199, 16
        %v748 = vsel %vm740, %v198, 16
        %v749 = vsel %vm741, %v199, 16
        %v750 = vsel %vm742, %v198, 16
        %v751 = vsel %vm743, %v199, 16
        %v752 = vsel %vm744, %v198, 16
        %v753 = vsel %vm745, %v199, 16
        %v754 = vsel %vm200, %v746, 2147483647
        %v755 = vsel %vm200, %v747, 2147483647
        %vm756 = vcmp.lt.s32.totalorder %v754, %v755
        %v757 = vsel %vm756, %v754, %v755
        %v758 = vrot.slane %v757, 4
        %vm759 = vcmp.lt.s32.totalorder %v757, %v758
        %v760 = vsel %vm759, %v757, %v758
        %v761 = vrot.slane %v760, 2
        %vm762 = vcmp.lt.s32.totalorder %v760, %v761
        %v763 = vsel %vm762, %v760, %v761
        %v764 = vrot.slane %v763, 1
        %vm765 = vcmp.lt.s32.totalorder %v763, %v764
        %v766 = vsel %vm765, %v763, %v764
        %v767 = vsel %vm200, %v748, 2147483647
        %v768 = vsel %vm200, %v749, 2147483647
        %vm769 = vcmp.lt.s32.totalorder %v767, %v768
        %v770 = vsel %vm769, %v767, %v768
        %v771 = vrot.slane %v770, 4
        %vm772 = vcmp.lt.s32.totalorder %v770, %v771
        %v773 = vsel %vm772, %v770, %v771
        %v774 = vrot.slane %v773, 2
        %vm775 = vcmp.lt.s32.totalorder %v773, %v774
        %v776 = vsel %vm775, %v773, %v774
        %v777 = vrot.slane %v776, 1
        %vm778 = vcmp.lt.s32.totalorder %v776, %v777
        %v779 = vsel %vm778, %v776, %v777
        %v780 = vsel %vm200, %v750, 2147483647
        %v781 = vsel %vm200, %v751, 2147483647
        %vm782 = vcmp.lt.s32.totalorder %v780, %v781
        %v783 = vsel %vm782, %v780, %v781
        %v784 = vrot.slane %v783, 4
        %vm785 = vcmp.lt.s32.totalorder %v783, %v784
        %v786 = vsel %vm785, %v783, %v784
        %v787 = vrot.slane %v786, 2
        %vm788 = vcmp.lt.s32.totalorder %v786, %v787
        %v789 = vsel %vm788, %v786, %v787
        %v790 = vrot.slane %v789, 1
        %vm791 = vcmp.lt.s32.totalorder %v789, %v790
        %v792 = vsel %vm791, %v789, %v790
        %v793 = vsel %vm200, %v752, 2147483647
        %v794 = vsel %vm200, %v753, 2147483647
        %vm795 = vcmp.lt.s32.totalorder %v793, %v794
        %v796 = vsel %vm795, %v793, %v794
        %v797 = vrot.slane %v796, 4
        %vm798 = vcmp.lt.s32.totalorder %v796, %v797
        %v799 = vsel %vm798, %v796, %v797
        %v800 = vrot.slane %v799, 2
        %vm801 = vcmp.lt.s32.totalorder %v799, %v800
        %v802 = vsel %vm801, %v799, %v800
        %v803 = vrot.slane %v802, 1
        %vm804 = vcmp.lt.s32.totalorder %v802, %v803
        %v805 = vsel %vm804, %v802, %v803
        %vm806 = vcmp.eq.s32.totalorder %v198, %v766
        %vm807 = vcmp.eq.s32.totalorder %v199, %v766
        %vm808 = vcmp.eq.s32.totalorder %v198, %v779
        %vm809 = vcmp.eq.s32.totalorder %v199, %v779
        %vm810 = vcmp.eq.s32.totalorder %v198, %v792
        %vm811 = vcmp.eq.s32.totalorder %v199, %v792
        %vm812 = vcmp.eq.s32.totalorder %v198, %v805
        %vm813 = vcmp.eq.s32.totalorder %v199, %v805
        %v814 = vsel %vm806, -inf, %v690
        %v815 = vsel %vm807, -inf, %v691
        %v816 = vsel %vm808, -inf, %v692
        %v817 = vsel %vm809, -inf, %v693
        %v818 = vsel %vm810, -inf, %v694
        %v819 = vsel %vm811, -inf, %v695
        %v820 = vsel %vm812, -inf, %v696
        %v821 = vsel %vm813, -inf, %v697
        %v822 = vsel %vm200, %v814, -inf
        %v823 = vsel %vm200, %v815, -inf
        %v824 = vmax.f32 %v822, %v823
        %v825 = vrot.slane %v824, 4
        %v826 = vmax.f32 %v824, %v825
        %v827 = vrot.slane %v826, 2
        %v828 = vmax.f32 %v826, %v827
        %v829 = vrot.slane %v828, 1
        %v830 = vmax.f32 %v828, %v829
        %v831 = vsel %vm200, %v816, -inf
        %v832 = vsel %vm200, %v817, -inf
        %v833 = vmax.f32 %v831, %v832
        %v834 = vrot.slane %v833, 4
        %v835 = vmax.f32 %v833, %v834
        %v836 = vrot.slane %v835, 2
        %v837 = vmax.f32 %v835, %v836
        %v838 = vrot.slane %v837, 1
        %v839 = vmax.f32 %v837, %v838
        %v840 = vsel %vm200, %v818, -inf
        %v841 = vsel %vm200, %v819, -inf
        %v842 = vmax.f32 %v840, %v841
        %v843 = vrot.slane %v842, 4
        %v844 = vmax.f32 %v842, %v843
        %v845 = vrot.slane %v844, 2
        %v846 = vmax.f32 %v844, %v845
        %v847 = vrot.slane %v846, 1
        %v848 = vmax.f32 %v846, %v847
        %v849 = vsel %vm200, %v820, -inf
        %v850 = vsel %vm200, %v821, -inf
        %v851 = vmax.f32 %v849, %v850
        %v852 = vrot.slane %v851, 4
        %v853 = vmax.f32 %v851, %v852
        %v854 = vrot.slane %v853, 2
        %v855 = vmax.f32 %v853, %v854
        %v856 = vrot.slane %v855, 1
        %v857 = vmax.f32 %v855, %v856
        %858 = vst.msk [vmem:[#allocation2 + $0x5] sm:$0x1] %vm237, %v830
        %859 = vst.msk [vmem:[#allocation2 + $0x15] sm:$0x1] %vm237, %v839
        %860 = vst.msk [vmem:[#allocation2 + $0x25] sm:$0x1] %vm237, %v848
        %861 = vst.msk [vmem:[#allocation2 + $0x35] sm:$0x1] %vm237, %v857
        %vm862 = vcmp.eq.f32.partialorder %v814, %v830
        %vm863 = vcmp.eq.f32.partialorder %v815, %v830
        %vm864 = vcmp.eq.f32.partialorder %v816, %v839
        %vm865 = vcmp.eq.f32.partialorder %v817, %v839
        %vm866 = vcmp.eq.f32.partialorder %v818, %v848
        %vm867 = vcmp.eq.f32.partialorder %v819, %v848
        %vm868 = vcmp.eq.f32.partialorder %v820, %v857
        %vm869 = vcmp.eq.f32.partialorder %v821, %v857
        %v870 = vsel %vm862, %v198, 16
        %v871 = vsel %vm863, %v199, 16
        %v872 = vsel %vm864, %v198, 16
        %v873 = vsel %vm865, %v199, 16
        %v874 = vsel %vm866, %v198, 16
        %v875 = vsel %vm867, %v199, 16
        %v876 = vsel %vm868, %v198, 16
        %v877 = vsel %vm869, %v199, 16
        %v878 = vsel %vm200, %v870, 2147483647
        %v879 = vsel %vm200, %v871, 2147483647
        %vm880 = vcmp.lt.s32.totalorder %v878, %v879
        %v881 = vsel %vm880, %v878, %v879
        %v882 = vrot.slane %v881, 4
        %vm883 = vcmp.lt.s32.totalorder %v881, %v882
        %v884 = vsel %vm883, %v881, %v882
        %v885 = vrot.slane %v884, 2
        %vm886 = vcmp.lt.s32.totalorder %v884, %v885
        %v887 = vsel %vm886, %v884, %v885
        %v888 = vrot.slane %v887, 1
        %vm889 = vcmp.lt.s32.totalorder %v887, %v888
        %v890 = vsel %vm889, %v887, %v888
        %v891 = vsel %vm200, %v872, 2147483647
        %v892 = vsel %vm200, %v873, 2147483647
        %vm893 = vcmp.lt.s32.totalorder %v891, %v892
        %v894 = vsel %vm893, %v891, %v892
        %v895 = vrot.slane %v894, 4
        %vm896 = vcmp.lt.s32.totalorder %v894, %v895
        %v897 = vsel %vm896, %v894, %v895
        %v898 = vrot.slane %v897, 2
        %vm899 = vcmp.lt.s32.totalorder %v897, %v898
        %v900 = vsel %vm899, %v897, %v898
        %v901 = vrot.slane %v900, 1
        %vm902 = vcmp.lt.s32.totalorder %v900, %v901
        %v903 = vsel %vm902, %v900, %v901
        %v904 = vsel %vm200, %v874, 2147483647
        %v905 = vsel %vm200, %v875, 2147483647
        %vm906 = vcmp.lt.s32.totalorder %v904, %v905
        %v907 = vsel %vm906, %v904, %v905
        %v908 = vrot.slane %v907, 4
        %vm909 = vcmp.lt.s32.totalorder %v907, %v908
        %v910 = vsel %vm909, %v907, %v908
        %v911 = vrot.slane %v910, 2
        %vm912 = vcmp.lt.s32.totalorder %v910, %v911
        %v913 = vsel %vm912, %v910, %v911
        %v914 = vrot.slane %v913, 1
        %vm915 = vcmp.lt.s32.totalorder %v913, %v914
        %v916 = vsel %vm915, %v913, %v914
        %v917 = vsel %vm200, %v876, 2147483647
        %v918 = vsel %vm200, %v877, 2147483647
        %vm919 = vcmp.lt.s32.totalorder %v917, %v918
        %v920 = vsel %vm919, %v917, %v918
        %v921 = vrot.slane %v920, 4
        %vm922 = vcmp.lt.s32.totalorder %v920, %v921
        %v923 = vsel %vm922, %v920, %v921
        %v924 = vrot.slane %v923, 2
        %vm925 = vcmp.lt.s32.totalorder %v923, %v924
        %v926 = vsel %vm925, %v923, %v924
        %v927 = vrot.slane %v926, 1
        %vm928 = vcmp.lt.s32.totalorder %v926, %v927
        %v929 = vsel %vm928, %v926, %v927
        %vm930 = vcmp.eq.s32.totalorder %v198, %v890
        %vm931 = vcmp.eq.s32.totalorder %v199, %v890
        %vm932 = vcmp.eq.s32.totalorder %v198, %v903
        %vm933 = vcmp.eq.s32.totalorder %v199, %v903
        %vm934 = vcmp.eq.s32.totalorder %v198, %v916
        %vm935 = vcmp.eq.s32.totalorder %v199, %v916
        %vm936 = vcmp.eq.s32.totalorder %v198, %v929
        %vm937 = vcmp.eq.s32.totalorder %v199, %v929
        %v938 = vsel %vm930, -inf, %v814
        %v939 = vsel %vm931, -inf, %v815
        %v940 = vsel %vm932, -inf, %v816
        %v941 = vsel %vm933, -inf, %v817
        %v942 = vsel %vm934, -inf, %v818
        %v943 = vsel %vm935, -inf, %v819
        %v944 = vsel %vm936, -inf, %v820
        %v945 = vsel %vm937, -inf, %v821
        %v946 = vsel %vm200, %v938, -inf
        %v947 = vsel %vm200, %v939, -inf
        %v948 = vmax.f32 %v946, %v947
        %v949 = vrot.slane %v948, 4
        %v950 = vmax.f32 %v948, %v949
        %v951 = vrot.slane %v950, 2
        %v952 = vmax.f32 %v950, %v951
        %v953 = vrot.slane %v952, 1
        %v954 = vmax.f32 %v952, %v953
        %v955 = vsel %vm200, %v940, -inf
        %v956 = vsel %vm200, %v941, -inf
        %v957 = vmax.f32 %v955, %v956
        %v958 = vrot.slane %v957, 4
        %v959 = vmax.f32 %v957, %v958
        %v960 = vrot.slane %v959, 2
        %v961 = vmax.f32 %v959, %v960
        %v962 = vrot.slane %v961, 1
        %v963 = vmax.f32 %v961, %v962
        %v964 = vsel %vm200, %v942, -inf
        %v965 = vsel %vm200, %v943, -inf
        %v966 = vmax.f32 %v964, %v965
        %v967 = vrot.slane %v966, 4
        %v968 = vmax.f32 %v966, %v967
        %v969 = vrot.slane %v968, 2
        %v970 = vmax.f32 %v968, %v969
        %v971 = vrot.slane %v970, 1
        %v972 = vmax.f32 %v970, %v971
        %v973 = vsel %vm200, %v944, -inf
        %v974 = vsel %vm200, %v945, -inf
        %v975 = vmax.f32 %v973, %v974
        %v976 = vrot.slane %v975, 4
        %v977 = vmax.f32 %v975, %v976
        %v978 = vrot.slane %v977, 2
        %v979 = vmax.f32 %v977, %v978
        %v980 = vrot.slane %v979, 1
        %v981 = vmax.f32 %v979, %v980
        %982 = vst.msk [vmem:[#allocation2 + $0x6] sm:$0x1] %vm237, %v954
        %983 = vst.msk [vmem:[#allocation2 + $0x16] sm:$0x1] %vm237, %v963
        %984 = vst.msk [vmem:[#allocation2 + $0x26] sm:$0x1] %vm237, %v972
        %985 = vst.msk [vmem:[#allocation2 + $0x36] sm:$0x1] %vm237, %v981
        %vm986 = vcmp.eq.f32.partialorder %v938, %v954
        %vm987 = vcmp.eq.f32.partialorder %v939, %v954
        %vm988 = vcmp.eq.f32.partialorder %v940, %v963
        %vm989 = vcmp.eq.f32.partialorder %v941, %v963
        %vm990 = vcmp.eq.f32.partialorder %v942, %v972
        %vm991 = vcmp.eq.f32.partialorder %v943, %v972
        %vm992 = vcmp.eq.f32.partialorder %v944, %v981
        %vm993 = vcmp.eq.f32.partialorder %v945, %v981
        %v994 = vsel %vm986, %v198, 16
        %v995 = vsel %vm987, %v199, 16
        %v996 = vsel %vm988, %v198, 16
        %v997 = vsel %vm989, %v199, 16
        %v998 = vsel %vm990, %v198, 16
        %v999 = vsel %vm991, %v199, 16
        %v1000 = vsel %vm992, %v198, 16
        %v1001 = vsel %vm993, %v199, 16
        %v1002 = vsel %vm200, %v994, 2147483647
        %v1003 = vsel %vm200, %v995, 2147483647
        %vm1004 = vcmp.lt.s32.totalorder %v1002, %v1003
        %v1005 = vsel %vm1004, %v1002, %v1003
        %v1006 = vrot.slane %v1005, 4
        %vm1007 = vcmp.lt.s32.totalorder %v1005, %v1006
        %v1008 = vsel %vm1007, %v1005, %v1006
        %v1009 = vrot.slane %v1008, 2
        %vm1010 = vcmp.lt.s32.totalorder %v1008, %v1009
        %v1011 = vsel %vm1010, %v1008, %v1009
        %v1012 = vrot.slane %v1011, 1
        %vm1013 = vcmp.lt.s32.totalorder %v1011, %v1012
        %v1014 = vsel %vm1013, %v1011, %v1012
        %v1015 = vsel %vm200, %v996, 2147483647
        %v1016 = vsel %vm200, %v997, 2147483647
        %vm1017 = vcmp.lt.s32.totalorder %v1015, %v1016
        %v1018 = vsel %vm1017, %v1015, %v1016
        %v1019 = vrot.slane %v1018, 4
        %vm1020 = vcmp.lt.s32.totalorder %v1018, %v1019
        %v1021 = vsel %vm1020, %v1018, %v1019
        %v1022 = vrot.slane %v1021, 2
        %vm1023 = vcmp.lt.s32.totalorder %v1021, %v1022
        %v1024 = vsel %vm1023, %v1021, %v1022
        %v1025 = vrot.slane %v1024, 1
        %vm1026 = vcmp.lt.s32.totalorder %v1024, %v1025
        %v1027 = vsel %vm1026, %v1024, %v1025
        %v1028 = vsel %vm200, %v998, 2147483647
        %v1029 = vsel %vm200, %v999, 2147483647
        %vm1030 = vcmp.lt.s32.totalorder %v1028, %v1029
        %v1031 = vsel %vm1030, %v1028, %v1029
        %v1032 = vrot.slane %v1031, 4
        %vm1033 = vcmp.lt.s32.totalorder %v1031, %v1032
        %v1034 = vsel %vm1033, %v1031, %v1032
        %v1035 = vrot.slane %v1034, 2
        %vm1036 = vcmp.lt.s32.totalorder %v1034, %v1035
        %v1037 = vsel %vm1036, %v1034, %v1035
        %v1038 = vrot.slane %v1037, 1
        %vm1039 = vcmp.lt.s32.totalorder %v1037, %v1038
        %v1040 = vsel %vm1039, %v1037, %v1038
        %v1041 = vsel %vm200, %v1000, 2147483647
        %v1042 = vsel %vm200, %v1001, 2147483647
        %vm1043 = vcmp.lt.s32.totalorder %v1041, %v1042
        %v1044 = vsel %vm1043, %v1041, %v1042
        %v1045 = vrot.slane %v1044, 4
        %vm1046 = vcmp.lt.s32.totalorder %v1044, %v1045
        %v1047 = vsel %vm1046, %v1044, %v1045
        %v1048 = vrot.slane %v1047, 2
        %vm1049 = vcmp.lt.s32.totalorder %v1047, %v1048
        %v1050 = vsel %vm1049, %v1047, %v1048
        %v1051 = vrot.slane %v1050, 1
        %vm1052 = vcmp.lt.s32.totalorder %v1050, %v1051
        %v1053 = vsel %vm1052, %v1050, %v1051
        %vm1054 = vcmp.eq.s32.totalorder %v198, %v1014
        %vm1055 = vcmp.eq.s32.totalorder %v199, %v1014
        %vm1056 = vcmp.eq.s32.totalorder %v198, %v1027
        %vm1057 = vcmp.eq.s32.totalorder %v199, %v1027
        %vm1058 = vcmp.eq.s32.totalorder %v198, %v1040
        %vm1059 = vcmp.eq.s32.totalorder %v199, %v1040
        %vm1060 = vcmp.eq.s32.totalorder %v198, %v1053
        %vm1061 = vcmp.eq.s32.totalorder %v199, %v1053
        %v1062 = vsel %vm1054, -inf, %v938
        %v1063 = vsel %vm1055, -inf, %v939
        %v1064 = vsel %vm1056, -inf, %v940
        %v1065 = vsel %vm1057, -inf, %v941
        %v1066 = vsel %vm1058, -inf, %v942
        %v1067 = vsel %vm1059, -inf, %v943
        %v1068 = vsel %vm1060, -inf, %v944
        %v1069 = vsel %vm1061, -inf, %v945
        %v1070 = vsel %vm200, %v1062, -inf
        %v1071 = vsel %vm200, %v1063, -inf
        %v1072 = vmax.f32 %v1070, %v1071
        %v1073 = vrot.slane %v1072, 4
        %v1074 = vmax.f32 %v1072, %v1073
        %v1075 = vrot.slane %v1074, 2
        %v1076 = vmax.f32 %v1074, %v1075
        %v1077 = vrot.slane %v1076, 1
        %v1078 = vmax.f32 %v1076, %v1077
        %v1079 = vsel %vm200, %v1064, -inf
        %v1080 = vsel %vm200, %v1065, -inf
        %v1081 = vmax.f32 %v1079, %v1080
        %v1082 = vrot.slane %v1081, 4
        %v1083 = vmax.f32 %v1081, %v1082
        %v1084 = vrot.slane %v1083, 2
        %v1085 = vmax.f32 %v1083, %v1084
        %v1086 = vrot.slane %v1085, 1
        %v1087 = vmax.f32 %v1085, %v1086
        %v1088 = vsel %vm200, %v1066, -inf
        %v1089 = vsel %vm200, %v1067, -inf
        %v1090 = vmax.f32 %v1088, %v1089
        %v1091 = vrot.slane %v1090, 4
        %v1092 = vmax.f32 %v1090, %v1091
        %v1093 = vrot.slane %v1092, 2
        %v1094 = vmax.f32 %v1092, %v1093
        %v1095 = vrot.slane %v1094, 1
        %v1096 = vmax.f32 %v1094, %v1095
        %v1097 = vsel %vm200, %v1068, -inf
        %v1098 = vsel %vm200, %v1069, -inf
        %v1099 = vmax.f32 %v1097, %v1098
        %v1100 = vrot.slane %v1099, 4
        %v1101 = vmax.f32 %v1099, %v1100
        %v1102 = vrot.slane %v1101, 2
        %v1103 = vmax.f32 %v1101, %v1102
        %v1104 = vrot.slane %v1103, 1
        %v1105 = vmax.f32 %v1103, %v1104
        %1106 = vst.msk [vmem:[#allocation2 + $0x7] sm:$0x1] %vm237, %v1078
        %1107 = vst.msk [vmem:[#allocation2 + $0x17] sm:$0x1] %vm237, %v1087
        %1108 = vst.msk [vmem:[#allocation2 + $0x27] sm:$0x1] %vm237, %v1096
        %1109 = vst.msk [vmem:[#allocation2 + $0x37] sm:$0x1] %vm237, %v1105
        %vm1110 = vcmp.eq.f32.partialorder %v1062, %v1078
        %vm1111 = vcmp.eq.f32.partialorder %v1063, %v1078
        %vm1112 = vcmp.eq.f32.partialorder %v1064, %v1087
        %vm1113 = vcmp.eq.f32.partialorder %v1065, %v1087
        %vm1114 = vcmp.eq.f32.partialorder %v1066, %v1096
        %vm1115 = vcmp.eq.f32.partialorder %v1067, %v1096
        %vm1116 = vcmp.eq.f32.partialorder %v1068, %v1105
        %vm1117 = vcmp.eq.f32.partialorder %v1069, %v1105
        %v1118 = vsel %vm1110, %v198, 16
        %v1119 = vsel %vm1111, %v199, 16
        %v1120 = vsel %vm1112, %v198, 16
        %v1121 = vsel %vm1113, %v199, 16
        %v1122 = vsel %vm1114, %v198, 16
        %v1123 = vsel %vm1115, %v199, 16
        %v1124 = vsel %vm1116, %v198, 16
        %v1125 = vsel %vm1117, %v199, 16
        %v1126 = vsel %vm200, %v1118, 2147483647
        %v1127 = vsel %vm200, %v1119, 2147483647
        %vm1128 = vcmp.lt.s32.totalorder %v1126, %v1127
        %v1129 = vsel %vm1128, %v1126, %v1127
        %v1130 = vrot.slane %v1129, 4
        %vm1131 = vcmp.lt.s32.totalorder %v1129, %v1130
        %v1132 = vsel %vm1131, %v1129, %v1130
        %v1133 = vrot.slane %v1132, 2
        %vm1134 = vcmp.lt.s32.totalorder %v1132, %v1133
        %v1135 = vsel %vm1134, %v1132, %v1133
        %v1136 = vrot.slane %v1135, 1
        %vm1137 = vcmp.lt.s32.totalorder %v1135, %v1136
        %v1138 = vsel %vm1137, %v1135, %v1136
        %v1139 = vsel %vm200, %v1120, 2147483647
        %v1140 = vsel %vm200, %v1121, 2147483647
        %vm1141 = vcmp.lt.s32.totalorder %v1139, %v1140
        %v1142 = vsel %vm1141, %v1139, %v1140
        %v1143 = vrot.slane %v1142, 4
        %vm1144 = vcmp.lt.s32.totalorder %v1142, %v1143
        %v1145 = vsel %vm1144, %v1142, %v1143
        %v1146 = vrot.slane %v1145, 2
        %vm1147 = vcmp.lt.s32.totalorder %v1145, %v1146
        %v1148 = vsel %vm1147, %v1145, %v1146
        %v1149 = vrot.slane %v1148, 1
        %vm1150 = vcmp.lt.s32.totalorder %v1148, %v1149
        %v1151 = vsel %vm1150, %v1148, %v1149
        %v1152 = vsel %vm200, %v1122, 2147483647
        %v1153 = vsel %vm200, %v1123, 2147483647
        %vm1154 = vcmp.lt.s32.totalorder %v1152, %v1153
        %v1155 = vsel %vm1154, %v1152, %v1153
        %v1156 = vrot.slane %v1155, 4
        %vm1157 = vcmp.lt.s32.totalorder %v1155, %v1156
        %v1158 = vsel %vm1157, %v1155, %v1156
        %v1159 = vrot.slane %v1158, 2
        %vm1160 = vcmp.lt.s32.totalorder %v1158, %v1159
        %v1161 = vsel %vm1160, %v1158, %v1159
        %v1162 = vrot.slane %v1161, 1
        %vm1163 = vcmp.lt.s32.totalorder %v1161, %v1162
        %v1164 = vsel %vm1163, %v1161, %v1162
        %v1165 = vsel %vm200, %v1124, 2147483647
        %v1166 = vsel %vm200, %v1125, 2147483647
        %vm1167 = vcmp.lt.s32.totalorder %v1165, %v1166
        %v1168 = vsel %vm1167, %v1165, %v1166
        %v1169 = vrot.slane %v1168, 4
        %vm1170 = vcmp.lt.s32.totalorder %v1168, %v1169
        %v1171 = vsel %vm1170, %v1168, %v1169
        %v1172 = vrot.slane %v1171, 2
        %vm1173 = vcmp.lt.s32.totalorder %v1171, %v1172
        %v1174 = vsel %vm1173, %v1171, %v1172
        %v1175 = vrot.slane %v1174, 1
        %vm1176 = vcmp.lt.s32.totalorder %v1174, %v1175
        %v1177 = vsel %vm1176, %v1174, %v1175
        %vm1178 = vcmp.eq.s32.totalorder %v198, %v1138
        %vm1179 = vcmp.eq.s32.totalorder %v199, %v1138
        %vm1180 = vcmp.eq.s32.totalorder %v198, %v1151
        %vm1181 = vcmp.eq.s32.totalorder %v199, %v1151
        %vm1182 = vcmp.eq.s32.totalorder %v198, %v1164
        %vm1183 = vcmp.eq.s32.totalorder %v199, %v1164
        %vm1184 = vcmp.eq.s32.totalorder %v198, %v1177
        %vm1185 = vcmp.eq.s32.totalorder %v199, %v1177
        %v1186 = vsel %vm1178, -inf, %v1062
        %v1187 = vsel %vm1179, -inf, %v1063
        %v1188 = vsel %vm1180, -inf, %v1064
        %v1189 = vsel %vm1181, -inf, %v1065
        %v1190 = vsel %vm1182, -inf, %v1066
        %v1191 = vsel %vm1183, -inf, %v1067
        %v1192 = vsel %vm1184, -inf, %v1068
        %v1193 = vsel %vm1185, -inf, %v1069
        %v1194 = vsel %vm200, %v1186, -inf
        %v1195 = vsel %vm200, %v1187, -inf
        %v1196 = vmax.f32 %v1194, %v1195
        %v1197 = vrot.slane %v1196, 4
        %v1198 = vmax.f32 %v1196, %v1197
        %v1199 = vrot.slane %v1198, 2
        %v1200 = vmax.f32 %v1198, %v1199
        %v1201 = vrot.slane %v1200, 1
        %v1202 = vmax.f32 %v1200, %v1201
        %v1203 = vsel %vm200, %v1188, -inf
        %v1204 = vsel %vm200, %v1189, -inf
        %v1205 = vmax.f32 %v1203, %v1204
        %v1206 = vrot.slane %v1205, 4
        %v1207 = vmax.f32 %v1205, %v1206
        %v1208 = vrot.slane %v1207, 2
        %v1209 = vmax.f32 %v1207, %v1208
        %v1210 = vrot.slane %v1209, 1
        %v1211 = vmax.f32 %v1209, %v1210
        %v1212 = vsel %vm200, %v1190, -inf
        %v1213 = vsel %vm200, %v1191, -inf
        %v1214 = vmax.f32 %v1212, %v1213
        %v1215 = vrot.slane %v1214, 4
        %v1216 = vmax.f32 %v1214, %v1215
        %v1217 = vrot.slane %v1216, 2
        %v1218 = vmax.f32 %v1216, %v1217
        %v1219 = vrot.slane %v1218, 1
        %v1220 = vmax.f32 %v1218, %v1219
        %v1221 = vsel %vm200, %v1192, -inf
        %v1222 = vsel %vm200, %v1193, -inf
        %v1223 = vmax.f32 %v1221, %v1222
        %v1224 = vrot.slane %v1223, 4
        %v1225 = vmax.f32 %v1223, %v1224
        %v1226 = vrot.slane %v1225, 2
        %v1227 = vmax.f32 %v1225, %v1226
        %v1228 = vrot.slane %v1227, 1
        %v1229 = vmax.f32 %v1227, %v1228
        %1230 = vst.msk [vmem:[#allocation2 + $0x8] sm:$0x1] %vm237, %v1202
        %1231 = vst.msk [vmem:[#allocation2 + $0x18] sm:$0x1] %vm237, %v1211
        %1232 = vst.msk [vmem:[#allocation2 + $0x28] sm:$0x1] %vm237, %v1220
        %1233 = vst.msk [vmem:[#allocation2 + $0x38] sm:$0x1] %vm237, %v1229
        %vm1234 = vcmp.eq.f32.partialorder %v1186, %v1202
        %vm1235 = vcmp.eq.f32.partialorder %v1187, %v1202
        %vm1236 = vcmp.eq.f32.partialorder %v1188, %v1211
        %vm1237 = vcmp.eq.f32.partialorder %v1189, %v1211
        %vm1238 = vcmp.eq.f32.partialorder %v1190, %v1220
        %vm1239 = vcmp.eq.f32.partialorder %v1191, %v1220
        %vm1240 = vcmp.eq.f32.partialorder %v1192, %v1229
        %vm1241 = vcmp.eq.f32.partialorder %v1193, %v1229
        %v1242 = vsel %vm1234, %v198, 16
        %v1243 = vsel %vm1235, %v199, 16
        %v1244 = vsel %vm1236, %v198, 16
        %v1245 = vsel %vm1237, %v199, 16
        %v1246 = vsel %vm1238, %v198, 16
        %v1247 = vsel %vm1239, %v199, 16
        %v1248 = vsel %vm1240, %v198, 16
        %v1249 = vsel %vm1241, %v199, 16
        %v1250 = vsel %vm200, %v1242, 2147483647
        %v1251 = vsel %vm200, %v1243, 2147483647
        %vm1252 = vcmp.lt.s32.totalorder %v1250, %v1251
        %v1253 = vsel %vm1252, %v1250, %v1251
        %v1254 = vrot.slane %v1253, 4
        %vm1255 = vcmp.lt.s32.totalorder %v1253, %v1254
        %v1256 = vsel %vm1255, %v1253, %v1254
        %v1257 = vrot.slane %v1256, 2
        %vm1258 = vcmp.lt.s32.totalorder %v1256, %v1257
        %v1259 = vsel %vm1258, %v1256, %v1257
        %v1260 = vrot.slane %v1259, 1
        %vm1261 = vcmp.lt.s32.totalorder %v1259, %v1260
        %v1262 = vsel %vm1261, %v1259, %v1260
        %v1263 = vsel %vm200, %v1244, 2147483647
        %v1264 = vsel %vm200, %v1245, 2147483647
        %vm1265 = vcmp.lt.s32.totalorder %v1263, %v1264
        %v1266 = vsel %vm1265, %v1263, %v1264
        %v1267 = vrot.slane %v1266, 4
        %vm1268 = vcmp.lt.s32.totalorder %v1266, %v1267
        %v1269 = vsel %vm1268, %v1266, %v1267
        %v1270 = vrot.slane %v1269, 2
        %vm1271 = vcmp.lt.s32.totalorder %v1269, %v1270
        %v1272 = vsel %vm1271, %v1269, %v1270
        %v1273 = vrot.slane %v1272, 1
        %vm1274 = vcmp.lt.s32.totalorder %v1272, %v1273
        %v1275 = vsel %vm1274, %v1272, %v1273
        %v1276 = vsel %vm200, %v1246, 2147483647
        %v1277 = vsel %vm200, %v1247, 2147483647
        %vm1278 = vcmp.lt.s32.totalorder %v1276, %v1277
        %v1279 = vsel %vm1278, %v1276, %v1277
        %v1280 = vrot.slane %v1279, 4
        %vm1281 = vcmp.lt.s32.totalorder %v1279, %v1280
        %v1282 = vsel %vm1281, %v1279, %v1280
        %v1283 = vrot.slane %v1282, 2
        %vm1284 = vcmp.lt.s32.totalorder %v1282, %v1283
        %v1285 = vsel %vm1284, %v1282, %v1283
        %v1286 = vrot.slane %v1285, 1
        %vm1287 = vcmp.lt.s32.totalorder %v1285, %v1286
        %v1288 = vsel %vm1287, %v1285, %v1286
        %v1289 = vsel %vm200, %v1248, 2147483647
        %v1290 = vsel %vm200, %v1249, 2147483647
        %vm1291 = vcmp.lt.s32.totalorder %v1289, %v1290
        %v1292 = vsel %vm1291, %v1289, %v1290
        %v1293 = vrot.slane %v1292, 4
        %vm1294 = vcmp.lt.s32.totalorder %v1292, %v1293
        %v1295 = vsel %vm1294, %v1292, %v1293
        %v1296 = vrot.slane %v1295, 2
        %vm1297 = vcmp.lt.s32.totalorder %v1295, %v1296
        %v1298 = vsel %vm1297, %v1295, %v1296
        %v1299 = vrot.slane %v1298, 1
        %vm1300 = vcmp.lt.s32.totalorder %v1298, %v1299
        %v1301 = vsel %vm1300, %v1298, %v1299
        %vm1302 = vcmp.eq.s32.totalorder %v198, %v1262
        %vm1303 = vcmp.eq.s32.totalorder %v199, %v1262
        %vm1304 = vcmp.eq.s32.totalorder %v198, %v1275
        %vm1305 = vcmp.eq.s32.totalorder %v199, %v1275
        %vm1306 = vcmp.eq.s32.totalorder %v198, %v1288
        %vm1307 = vcmp.eq.s32.totalorder %v199, %v1288
        %vm1308 = vcmp.eq.s32.totalorder %v198, %v1301
        %vm1309 = vcmp.eq.s32.totalorder %v199, %v1301
        %v1310 = vsel %vm1302, -inf, %v1186
        %v1311 = vsel %vm1303, -inf, %v1187
        %v1312 = vsel %vm1304, -inf, %v1188
        %v1313 = vsel %vm1305, -inf, %v1189
        %v1314 = vsel %vm1306, -inf, %v1190
        %v1315 = vsel %vm1307, -inf, %v1191
        %v1316 = vsel %vm1308, -inf, %v1192
        %v1317 = vsel %vm1309, -inf, %v1193
        %v1318 = vsel %vm200, %v1310, -inf
        %v1319 = vsel %vm200, %v1311, -inf
        %v1320 = vmax.f32 %v1318, %v1319
        %v1321 = vrot.slane %v1320, 4
        %v1322 = vmax.f32 %v1320, %v1321
        %v1323 = vrot.slane %v1322, 2
        %v1324 = vmax.f32 %v1322, %v1323
        %v1325 = vrot.slane %v1324, 1
        %v1326 = vmax.f32 %v1324, %v1325
        %v1327 = vsel %vm200, %v1312, -inf
        %v1328 = vsel %vm200, %v1313, -inf
        %v1329 = vmax.f32 %v1327, %v1328
        %v1330 = vrot.slane %v1329, 4
        %v1331 = vmax.f32 %v1329, %v1330
        %v1332 = vrot.slane %v1331, 2
        %v1333 = vmax.f32 %v1331, %v1332
        %v1334 = vrot.slane %v1333, 1
        %v1335 = vmax.f32 %v1333, %v1334
        %v1336 = vsel %vm200, %v1314, -inf
        %v1337 = vsel %vm200, %v1315, -inf
        %v1338 = vmax.f32 %v1336, %v1337
        %v1339 = vrot.slane %v1338, 4
        %v1340 = vmax.f32 %v1338, %v1339
        %v1341 = vrot.slane %v1340, 2
        %v1342 = vmax.f32 %v1340, %v1341
        %v1343 = vrot.slane %v1342, 1
        %v1344 = vmax.f32 %v1342, %v1343
        %v1345 = vsel %vm200, %v1316, -inf
        %v1346 = vsel %vm200, %v1317, -inf
        %v1347 = vmax.f32 %v1345, %v1346
        %v1348 = vrot.slane %v1347, 4
        %v1349 = vmax.f32 %v1347, %v1348
        %v1350 = vrot.slane %v1349, 2
        %v1351 = vmax.f32 %v1349, %v1350
        %v1352 = vrot.slane %v1351, 1
        %v1353 = vmax.f32 %v1351, %v1352
        %1354 = vst.msk [vmem:[#allocation2 + $0x9] sm:$0x1] %vm237, %v1326
        %1355 = vst.msk [vmem:[#allocation2 + $0x19] sm:$0x1] %vm237, %v1335
        %1356 = vst.msk [vmem:[#allocation2 + $0x29] sm:$0x1] %vm237, %v1344
        %1357 = vst.msk [vmem:[#allocation2 + $0x39] sm:$0x1] %vm237, %v1353
        %v1358 = vld [vmem:[%s2] sm:$0xff]
        %v1359 = vld [vmem:[%s1] sm:$0xff]
        %v1360 = vld [vmem:[#allocation2] sm:$0xff]
        %v1361 = vld [vmem:[#allocation2 + $0x8] sm:$0x3]
        %s1362 = scalar_lea.vmem %s1, 8
        %v1363 = vld [vmem:[%s1362] sm:$0xff]
        %s1364 = scalar_lea.vmem [#allocation2], 16
        %v1365 = vld [vmem:[%s1364] sm:$0xff]
        %v1366 = vld [vmem:[%s1364 + $0x8] sm:$0x3]
        %vm1367 = vcmask 80896
        %v1369 = vsel %vm1367, %v1363, 0
        %vm1371 = vcmask 1041408
        %v1373 = vsel %vm1371, %v1366, 0
        %1375 = vmatprep.subr.mxu0 0.0
        %1376 = vmatpush1.msra.mxu0 %v1365
        %1377 = vmatprep.subr.mxu0 0.0
        %1378 = vmatpush1.msra.mxu0 %v1373
        %1379 = vmatprep.subr.mxu0 0.0
        %1380 = vmatpush1.msra.mxu0 0.0
        %1381 = vmatprep.subr.mxu0 0.0
        %1382 = vmatpush1.msra.mxu0 0.0
        %1383 = vmatprep.subr.mxu0 0.0
        %1384 = vmatpush1.msra.mxu0 0.0
        %1385 = vmatprep.subr.mxu0 0.0
        %1386 = vmatpush1.msra.mxu0 0.0
        %1387 = vmatprep.subr.mxu0 0.0
        %1388 = vmatpush1.msra.mxu0 0.0
        %1389 = vmatprep.subr.mxu0 0.0
        %1390 = vmatpush1.msra.mxu0 0.0
        %1391 = vmatprep.subr.mxu0 0.0
        %1392 = vmatpush1.msra.mxu0 0.0
        %1393 = vmatprep.subr.mxu0 0.0
        %1394 = vmatpush1.msra.mxu0 0.0
        %1395 = vmatprep.subr.mxu0 0.0
        %1396 = vmatpush1.msra.mxu0 0.0
        %1397 = vmatprep.subr.mxu0 0.0
        %1398 = vmatpush1.msra.mxu0 0.0
        %1399 = vmatprep.subr.mxu0 0.0
        %1400 = vmatpush1.msra.mxu0 0.0
        %1401 = vmatprep.subr.mxu0 0.0
        %1402 = vmatpush1.msra.mxu0 0.0
        %1403 = vmatprep.subr.mxu0 0.0
        %1404 = vmatpush1.msra.mxu0 0.0
        %1405 = vmatprep.subr.mxu0 0.0
        %1406 = vmatpush1.msra.mxu0 0.0
        %1407 = vmatprep.subr.mxu0 0.0
        %1408 = vmatpush1.msra.mxu0 0.0
        %1409 = vmatprep.subr.mxu0 0.0
        %1410 = vmatpush1.msra.mxu0 0.0
        %1411 = vmatprep.subr.mxu0 0.0
        %1412 = vmatpush1.msra.mxu0 0.0
        %1413 = vmatprep.subr.mxu0 0.0
        %1414 = vmatpush1.msra.mxu0 0.0
        %1415 = vmatprep.subr.mxu0 0.0
        %1416 = vmatpush1.msra.mxu0 0.0
        %1417 = vmatprep.subr.mxu0 0.0
        %1418 = vmatpush1.msra.mxu0 0.0
        %1419 = vmatprep.subr.mxu0 0.0
        %1420 = vmatpush1.msra.mxu0 0.0
        %1421 = vmatprep.subr.mxu0 0.0
        %1422 = vmatpush1.msra.mxu0 0.0
        %1423 = vmatprep.subr.mxu0 0.0
        %1424 = vmatpush1.msra.mxu0 0.0
        %1425 = vmatprep.subr.mxu0 0.0
        %1426 = vmatpush1.msra.mxu0 0.0
        %1427 = vmatprep.subr.mxu0 0.0
        %1428 = vmatpush1.msra.mxu0 0.0
        %1429 = vmatprep.subr.mxu0 0.0
        %1430 = vmatpush1.msra.mxu0 0.0
        %1431 = vmatprep.subr.mxu0 0.0
        %1432 = vmatpush1.msra.mxu0 0.0
        %1433 = vmatprep.subr.mxu0 0.0
        %1434 = vmatpush1.msra.mxu0 0.0
        %1435 = vmatprep.subr.mxu0 0.0
        %1436 = vmatpush1.msra.mxu0 0.0
        %1437 = vmatprep.subr.mxu0 0.0
        %1438 = vmatpush1.msra.mxu0 0.0
        %1439 = vmatprep.mubr.f32.mxu0 0.0
        %1440 = vmatmul.mubr.f32.gmra.mrb[0].mxu0 %v1369
        %v1441 = vpop.f32.mrb[0].mxu0
        %v1442 = vadd.f32 0.0, %v1441
        %v1443 = vpop.f32.mrb[0].mxu0
        %1444 = vdwg.mxu0
        %v1446 = vsel %vm1367, %v1359, 0
        %v1449 = vsel %vm1371, %v1361, 0
        %1451 = vmatprep.subr.mxu0 0.0
        %1452 = vmatpush1.msra.mxu0 %v1360
        %1453 = vmatprep.subr.mxu0 0.0
        %1454 = vmatpush1.msra.mxu0 %v1449
        %1455 = vmatprep.subr.mxu0 0.0
        %1456 = vmatpush1.msra.mxu0 0.0
        %1457 = vmatprep.subr.mxu0 0.0
        %1458 = vmatpush1.msra.mxu0 0.0
        %1459 = vmatprep.subr.mxu0 0.0
        %1460 = vmatpush1.msra.mxu0 0.0
        %1461 = vmatprep.subr.mxu0 0.0
        %1462 = vmatpush1.msra.mxu0 0.0
        %1463 = vmatprep.subr.mxu0 0.0
        %1464 = vmatpush1.msra.mxu0 0.0
        %1465 = vmatprep.subr.mxu0 0.0
        %1466 = vmatpush1.msra.mxu0 0.0
        %1467 = vmatprep.subr.mxu0 0.0
        %1468 = vmatpush1.msra.mxu0 0.0
        %1469 = vmatprep.subr.mxu0 0.0
        %1470 = vmatpush1.msra.mxu0 0.0
        %1471 = vmatprep.subr.mxu0 0.0
        %1472 = vmatpush1.msra.mxu0 0.0
        %1473 = vmatprep.subr.mxu0 0.0
        %1474 = vmatpush1.msra.mxu0 0.0
        %1475 = vmatprep.subr.mxu0 0.0
        %1476 = vmatpush1.msra.mxu0 0.0
        %1477 = vmatprep.subr.mxu0 0.0
        %1478 = vmatpush1.msra.mxu0 0.0
        %1479 = vmatprep.subr.mxu0 0.0
        %1480 = vmatpush1.msra.mxu0 0.0
        %1481 = vmatprep.subr.mxu0 0.0
        %1482 = vmatpush1.msra.mxu0 0.0
        %1483 = vmatprep.subr.mxu0 0.0
        %1484 = vmatpush1.msra.mxu0 0.0
        %1485 = vmatprep.subr.mxu0 0.0
        %1486 = vmatpush1.msra.mxu0 0.0
        %1487 = vmatprep.subr.mxu0 0.0
        %1488 = vmatpush1.msra.mxu0 0.0
        %1489 = vmatprep.subr.mxu0 0.0
        %1490 = vmatpush1.msra.mxu0 0.0
        %1491 = vmatprep.subr.mxu0 0.0
        %1492 = vmatpush1.msra.mxu0 0.0
        %1493 = vmatprep.subr.mxu0 0.0
        %1494 = vmatpush1.msra.mxu0 0.0
        %1495 = vmatprep.subr.mxu0 0.0
        %1496 = vmatpush1.msra.mxu0 0.0
        %1497 = vmatprep.subr.mxu0 0.0
        %1498 = vmatpush1.msra.mxu0 0.0
        %1499 = vmatprep.subr.mxu0 0.0
        %1500 = vmatpush1.msra.mxu0 0.0
        %1501 = vmatprep.subr.mxu0 0.0
        %1502 = vmatpush1.msra.mxu0 0.0
        %1503 = vmatprep.subr.mxu0 0.0
        %1504 = vmatpush1.msra.mxu0 0.0
        %1505 = vmatprep.subr.mxu0 0.0
        %1506 = vmatpush1.msra.mxu0 0.0
        %1507 = vmatprep.subr.mxu0 0.0
        %1508 = vmatpush1.msra.mxu0 0.0
        %1509 = vmatprep.subr.mxu0 0.0
        %1510 = vmatpush1.msra.mxu0 0.0
        %1511 = vmatprep.subr.mxu0 0.0
        %1512 = vmatpush1.msra.mxu0 0.0
        %1513 = vmatprep.subr.mxu0 0.0
        %1514 = vmatpush1.msra.mxu0 0.0
        %1515 = vmatprep.mubr.f32.mxu0 0.0
        %1516 = vmatmul.mubr.f32.gmra.mrb[0].mxu0 %v1446
        %v1517 = vpop.f32.mrb[0].mxu0
        %v1518 = vadd.f32 %v1442, %v1517
        %v1519 = vpop.f32.mrb[0].mxu0
        %1520 = vdwg.mxu0
        %s1521 = scalar_lea.vmem %s1, 16
        %v1522 = vld [vmem:[%s1521] sm:$0xff]
        %s1523 = scalar_lea.vmem [#allocation2], 32
        %v1524 = vld [vmem:[%s1523] sm:$0xff]
        %v1525 = vld [vmem:[%s1523 + $0x8] sm:$0x3]
        %v1527 = vsel %vm1367, %v1522, 0
        %v1530 = vsel %vm1371, %v1525, 0
        %1532 = vmatprep.subr.mxu0 0.0
        %1533 = vmatpush1.msra.mxu0 %v1524
        %1534 = vmatprep.subr.mxu0 0.0
        %1535 = vmatpush1.msra.mxu0 %v1530
        %1536 = vmatprep.subr.mxu0 0.0
        %1537 = vmatpush1.msra.mxu0 0.0
        %1538 = vmatprep.subr.mxu0 0.0
        %1539 = vmatpush1.msra.mxu0 0.0
        %1540 = vmatprep.subr.mxu0 0.0
        %1541 = vmatpush1.msra.mxu0 0.0
        %1542 = vmatprep.subr.mxu0 0.0
        %1543 = vmatpush1.msra.mxu0 0.0
        %1544 = vmatprep.subr.mxu0 0.0
        %1545 = vmatpush1.msra.mxu0 0.0
        %1546 = vmatprep.subr.mxu0 0.0
        %1547 = vmatpush1.msra.mxu0 0.0
        %1548 = vmatprep.subr.mxu0 0.0
        %1549 = vmatpush1.msra.mxu0 0.0
        %1550 = vmatprep.subr.mxu0 0.0
        %1551 = vmatpush1.msra.mxu0 0.0
        %1552 = vmatprep.subr.mxu0 0.0
        %1553 = vmatpush1.msra.mxu0 0.0
        %1554 = vmatprep.subr.mxu0 0.0
        %1555 = vmatpush1.msra.mxu0 0.0
        %1556 = vmatprep.subr.mxu0 0.0
        %1557 = vmatpush1.msra.mxu0 0.0
        %1558 = vmatprep.subr.mxu0 0.0
        %1559 = vmatpush1.msra.mxu0 0.0
        %1560 = vmatprep.subr.mxu0 0.0
        %1561 = vmatpush1.msra.mxu0 0.0
        %1562 = vmatprep.subr.mxu0 0.0
        %1563 = vmatpush1.msra.mxu0 0.0
        %1564 = vmatprep.subr.mxu0 0.0
        %1565 = vmatpush1.msra.mxu0 0.0
        %1566 = vmatprep.subr.mxu0 0.0
        %1567 = vmatpush1.msra.mxu0 0.0
        %1568 = vmatprep.subr.mxu0 0.0
        %1569 = vmatpush1.msra.mxu0 0.0
        %1570 = vmatprep.subr.mxu0 0.0
        %1571 = vmatpush1.msra.mxu0 0.0
        %1572 = vmatprep.subr.mxu0 0.0
        %1573 = vmatpush1.msra.mxu0 0.0
        %1574 = vmatprep.subr.mxu0 0.0
        %1575 = vmatpush1.msra.mxu0 0.0
        %1576 = vmatprep.subr.mxu0 0.0
        %1577 = vmatpush1.msra.mxu0 0.0
        %1578 = vmatprep.subr.mxu0 0.0
        %1579 = vmatpush1.msra.mxu0 0.0
        %1580 = vmatprep.subr.mxu0 0.0
        %1581 = vmatpush1.msra.mxu0 0.0
        %1582 = vmatprep.subr.mxu0 0.0
        %1583 = vmatpush1.msra.mxu0 0.0
        %1584 = vmatprep.subr.mxu0 0.0
        %1585 = vmatpush1.msra.mxu0 0.0
        %1586 = vmatprep.subr.mxu0 0.0
        %1587 = vmatpush1.msra.mxu0 0.0
        %1588 = vmatprep.subr.mxu0 0.0
        %1589 = vmatpush1.msra.mxu0 0.0
        %1590 = vmatprep.subr.mxu0 0.0
        %1591 = vmatpush1.msra.mxu0 0.0
        %1592 = vmatprep.subr.mxu0 0.0
        %1593 = vmatpush1.msra.mxu0 0.0
        %1594 = vmatprep.subr.mxu0 0.0
        %1595 = vmatpush1.msra.mxu0 0.0
        %1596 = vmatprep.mubr.f32.mxu0 0.0
        %1597 = vmatmul.mubr.f32.gmra.mrb[0].mxu0 %v1527
        %v1598 = vpop.f32.mrb[0].mxu0
        %v1599 = vadd.f32 0.0, %v1598
        %v1600 = vpop.f32.mrb[0].mxu0
        %1601 = vdwg.mxu0
        %v1602 = vadd.f32 %v1518, %v1599
        %s1603 = scalar_lea.vmem %s1, 24
        %v1604 = vld [vmem:[%s1603] sm:$0xff]
        %s1605 = scalar_lea.vmem [#allocation2], 48
        %v1606 = vld [vmem:[%s1605] sm:$0xff]
        %v1607 = vld [vmem:[%s1605 + $0x8] sm:$0x3]
        %v1609 = vsel %vm1367, %v1604, 0
        %v1612 = vsel %vm1371, %v1607, 0
        %1614 = vmatprep.subr.mxu0 0.0
        %1615 = vmatpush1.msra.mxu0 %v1606
        %1616 = vmatprep.subr.mxu0 0.0
        %1617 = vmatpush1.msra.mxu0 %v1612
        %1618 = vmatprep.subr.mxu0 0.0
        %1619 = vmatpush1.msra.mxu0 0.0
        %1620 = vmatprep.subr.mxu0 0.0
        %1621 = vmatpush1.msra.mxu0 0.0
        %1622 = vmatprep.subr.mxu0 0.0
        %1623 = vmatpush1.msra.mxu0 0.0
        %1624 = vmatprep.subr.mxu0 0.0
        %1625 = vmatpush1.msra.mxu0 0.0
        %1626 = vmatprep.subr.mxu0 0.0
        %1627 = vmatpush1.msra.mxu0 0.0
        %1628 = vmatprep.subr.mxu0 0.0
        %1629 = vmatpush1.msra.mxu0 0.0
        %1630 = vmatprep.subr.mxu0 0.0
        %1631 = vmatpush1.msra.mxu0 0.0
        %1632 = vmatprep.subr.mxu0 0.0
        %1633 = vmatpush1.msra.mxu0 0.0
        %1634 = vmatprep.subr.mxu0 0.0
        %1635 = vmatpush1.msra.mxu0 0.0
        %1636 = vmatprep.subr.mxu0 0.0
        %1637 = vmatpush1.msra.mxu0 0.0
        %1638 = vmatprep.subr.mxu0 0.0
        %1639 = vmatpush1.msra.mxu0 0.0
        %1640 = vmatprep.subr.mxu0 0.0
        %1641 = vmatpush1.msra.mxu0 0.0
        %1642 = vmatprep.subr.mxu0 0.0
        %1643 = vmatpush1.msra.mxu0 0.0
        %1644 = vmatprep.subr.mxu0 0.0
        %1645 = vmatpush1.msra.mxu0 0.0
        %1646 = vmatprep.subr.mxu0 0.0
        %1647 = vmatpush1.msra.mxu0 0.0
        %1648 = vmatprep.subr.mxu0 0.0
        %1649 = vmatpush1.msra.mxu0 0.0
        %1650 = vmatprep.subr.mxu0 0.0
        %1651 = vmatpush1.msra.mxu0 0.0
        %1652 = vmatprep.subr.mxu0 0.0
        %1653 = vmatpush1.msra.mxu0 0.0
        %1654 = vmatprep.subr.mxu0 0.0
        %1655 = vmatpush1.msra.mxu0 0.0
        %1656 = vmatprep.subr.mxu0 0.0
        %1657 = vmatpush1.msra.mxu0 0.0
        %1658 = vmatprep.subr.mxu0 0.0
        %1659 = vmatpush1.msra.mxu0 0.0
        %1660 = vmatprep.subr.mxu0 0.0
        %1661 = vmatpush1.msra.mxu0 0.0
        %1662 = vmatprep.subr.mxu0 0.0
        %1663 = vmatpush1.msra.mxu0 0.0
        %1664 = vmatprep.subr.mxu0 0.0
        %1665 = vmatpush1.msra.mxu0 0.0
        %1666 = vmatprep.subr.mxu0 0.0
        %1667 = vmatpush1.msra.mxu0 0.0
        %1668 = vmatprep.subr.mxu0 0.0
        %1669 = vmatpush1.msra.mxu0 0.0
        %1670 = vmatprep.subr.mxu0 0.0
        %1671 = vmatpush1.msra.mxu0 0.0
        %1672 = vmatprep.subr.mxu0 0.0
        %1673 = vmatpush1.msra.mxu0 0.0
        %1674 = vmatprep.subr.mxu0 0.0
        %1675 = vmatpush1.msra.mxu0 0.0
        %1676 = vmatprep.subr.mxu0 0.0
        %1677 = vmatpush1.msra.mxu0 0.0
        %1678 = vmatprep.mubr.f32.mxu0 0.0
        %1679 = vmatmul.mubr.f32.gmra.mrb[0].mxu0 %v1609
        %v1680 = vpop.f32.mrb[0].mxu0
        %v1681 = vadd.f32 0.0, %v1680
        %v1682 = vpop.f32.mrb[0].mxu0
        %1683 = vdwg.mxu0
        %v1684 = vadd.f32 %v1602, %v1681
        %1686 = vset.pattern.permute.xlu0 0
        %1687 = vperm.xlu0 %1686, %v1358
        %v1688 = vpop.permute.xlu0 %1687
        %v1690 = vadd.f32 %v1684, %v1688
        %1691 = vst.msk [vmem:[%s188] sm:$0xff] %vm200, %v1690
        %s1692 = sand.u32 %s96, 1
        %s1693 = scalar_lea.sflag [#allocation5], %s1692
        %s1694 = sand.u32 %s96, 1
        %s1695 = smul.addr %s1694, 8
        %s1696 = scalar_lea.vmem [#allocation6], %s1695
        // Predicated region
        $region37: #{probe_forward.1} parent=31 // pred_check
          %p1697 = pneg %p106
        $region38: #{probe_forward.1} parent=31 // pred_check_branch
          %1699 = sbr.rel (%p1697) target = $region40
        $region39: #{probe_forward.1} parent=31 // pred_region
          %s1701 = ssub.s32 128, 128
          %1702 = vsyncadd %s1693, %s1701
          %s1703 = smul.addr %s20, 128
          %s1704 = scalar_lea.hbm %s3, %s1703
          %s1706 = sshll.u32 %s1696, 4
          %s1707 = int_to_ptr.vmem [resolvable:$true] %s1706
          %1709 = dma.vmem_to_hbm [thread:$0]  %s1707, 128, %s1704, %s1693
        $region40: #{probe_forward.1} parent=31 // pred_fallthru
          _
      $region32: #{probe_forward.1} parent=5 // pred_fallthru
        _
      %p1710 = scmp.le.s32.totalorder 2, %s15
      // Predicated region
      $region41: #{probe_forward.1} parent=5 // pred_check
        %p1711 = pneg %p1710
      $region42: #{probe_forward.1} parent=5 // pred_check_branch
        %1713 = sbr.rel (%p1711) target = $region44
      $region43: #{probe_forward.1} parent=5 // pred_region
        %s1714 = ssub.s32 %s15, 2
        // Predicated region
        $region45: #{probe_forward.1} parent=43 // pred_check
          %p1715 = pneg %p112
        $region46: #{probe_forward.1} parent=43 // pred_check_branch
          %1717 = sbr.rel (%p1715) target = $region48
        $region47: #{probe_forward.1} parent=43 // pred_region
          %s1718 = sand.u32 %s97, 1
          %s1719 = scalar_lea.sflag [#allocation5], %s1718
          %s1720 = sand.u32 %s97, 1
          %s1721 = smul.addr %s1720, 8
          %s1722 = scalar_lea.vmem [#allocation6], %s1721
          %1723 = dma.done %s1719, 128
        $region48: #{probe_forward.1} parent=43 // pred_fallthru
          _
      $region44: #{probe_forward.1} parent=5 // pred_fallthru
        _
    $region6: #{probe_forward.1} parent=1 // loop_footer
      %s19 = sadd.s32 1, %s15
    $region7: #{probe_forward.1} parent=1 // loop_footer_branch
      %14 = sbr.rel target = $region3
    $region8: #{probe_forward.1} parent=1 // loop_exit
      _
    %1724 = vsyncpa [#allocation4], 1
    %s1725 = scalar_lea.sflag [#allocation4], 1
    %1726 = vsyncpa %s1725, 1
    %1727 = vsyncpa [#allocation5], 1
    %s1728 = scalar_lea.sflag [#allocation5], 1
    %1729 = vsyncpa %s1728, 1

</llo_original>
